<compile_context>
chip_gen: v6e
topology: v6e:2x2x1
jax: 0.10.0
libtpu: 0.0.40
codegen_flags: <defaults>
</compile_context>

<pallas_src>
import functools
import math

import jax
import jax.numpy as jnp
from jax.experimental import pallas as pl
from jax.experimental.pallas import tpu as pltpu


# --------------------------------------------------------------------------------- kernel

def _flash_cross_attn_kernel(*refs, scale, n_heads, has_mask, mix):
    if has_mask:
        q_ref, k_ref, v_ref, mask_ref, o_ref, m_scr, l_scr, acc_scr = refs
    else:
        q_ref, k_ref, v_ref, o_ref, m_scr, l_scr, acc_scr = refs
        mask_ref = None

    s_step = pl.program_id(2)
    n_s = pl.num_programs(2)

    H = n_heads
    E = q_ref.shape[-1] // H
    Dv = v_ref.shape[-1] // H

    @pl.when(s_step == 0)
    def _init():
        m_scr[...] = jnp.full(m_scr.shape, -jnp.inf, dtype=m_scr.dtype)
        l_scr[...] = jnp.zeros(l_scr.shape, dtype=l_scr.dtype)
        acc_scr[...] = jnp.zeros(acc_scr.shape, dtype=acc_scr.dtype)

    q = q_ref[0]                                   # (tL, H*E)  lane-dense load
    k = k_ref[0]                                   # (tS, H*E)
    v = v_ref[0]                                   # (tS, H*Dv)
    mask = mask_ref[...] if has_mask else None     # (tL, tS), post-softmax multiplier

    for h in range(H):                             # static unroll; independent per-head chains
        q_h = q[:, h * E:(h + 1) * E]              # (tL, E)  static lane slice (VMEM)
        k_h = k[:, h * E:(h + 1) * E]              # (tS, E)
        v_h = v[:, h * Dv:(h + 1) * Dv]            # (tS, Dv)

        # scores_h[l, s] = sum_e q_h[l, e] * k_h[s, e]
        s = jax.lax.dot_general(
            q_h, k_h, (((1,), (1,)), ((), ())),
            preferred_element_type=jnp.float32) * scale            # (tL, tS) f32

        m_prev = m_scr[h]                                           # (tL, 1)
        m_new = jnp.maximum(m_prev, jnp.max(s, axis=-1, keepdims=True))
        alpha = jnp.exp(m_prev - m_new)                             # (tL, 1)
        p = jnp.exp(s - m_new)                                      # (tL, tS), UNMASKED

        # Denominator from UNMASKED probabilities: the reference applies the mask after
        # softmax and does not renormalise.
        l_scr[h] = alpha * l_scr[h] + jnp.sum(p, axis=-1, keepdims=True)
        m_scr[h] = m_new

        if mask is not None:
            p = p * mask                                            # numerator / PV path only

        acc_scr[h] = alpha * acc_scr[h] + jax.lax.dot_general(
            p.astype(v_h.dtype), v_h, (((1,), (0,)), ((), ())),
            preferred_element_type=jnp.float32)                     # (tL, Dv) f32

    @pl.when(s_step == n_s - 1)
    def _finalize():
        for h in range(H):
            r = pl.reciprocal(l_scr[h], approx=True)                # EUP
            o_h = (acc_scr[h] * r).astype(o_ref.dtype)              # (tL, Dv)
            if mix:
                o_ref[0, h] = o_h                                   # into (1, H, tL, Dv)
            else:
                o_ref[0, :, h * Dv:(h + 1) * Dv] = o_h              # lane slice of (1, tL, H*Dv)


# -------------------------------------------------------------------------------- wrapper

def _pick_tile(dim, target, granule):
    """Largest tile <= target that divides `dim` and is a multiple of `granule`;
    falls back to the full dim (block == full array dim is always legal)."""
    t = min(target, dim)
    t -= t % granule
    while t >= granule:
        if dim % t == 0:
            return t
        t -= granule
    return dim


def cross_attention(queries, keys, values, *, n_heads, mask=None, mix=True,
                    block_l=128, block_s=256, kernel_dtype=None):
    """CrossAttention.forward — queries (B,L,Dm), keys (B,S,Dm), values (B,S,Dmv),
    mask (L,S) applied post-softmax.  Returns (B, L, Dmv)."""
    B, L, Dm = queries.shape
    S = keys.shape[1]
    Dmv = values.shape[-1]
    H = n_heads
    assert Dm % H == 0 and Dmv % H == 0
    E = Dm // H
    Dv = Dmv // H
    scale = 1.0 / math.sqrt(E)                    # MaskAttention default scale

    if kernel_dtype is not None:                  # e.g. jnp.bfloat16 for the MXU fast path
        queries = queries.astype(kernel_dtype)
        keys = keys.astype(kernel_dtype)
        values = values.astype(kernel_dtype)
    out_dtype = queries.dtype

    # Tile knobs (per-chip: <=256 on v7x, up to 512 on v6e, 128 on v5e).
    tL = _pick_tile(L, block_l, 8)                # second-minor of blocks: mult of 8 or full
    tS = _pick_tile(S, block_s, 128)              # last dim of mask block: mult of 128 or full
    nL, nS = L // tL, S // tS

    in_specs = [
        pl.BlockSpec((1, tL, Dm), lambda b, l, s: (b, l, 0)),      # Q: resident across s
        pl.BlockSpec((1, tS, Dm), lambda b, l, s: (b, s, 0)),      # K: streamed
        pl.BlockSpec((1, tS, Dmv), lambda b, l, s: (b, s, 0)),     # V: streamed
    ]
    args = [queries, keys, values]
    if mask is not None:
        args.append(mask.astype(jnp.float32))
        in_specs.append(pl.BlockSpec((tL, tS), lambda b, l, s: (l, s)))

    if mix:
        # mix=True quirk == row-major reinterpretation of the contiguous (B,H,L,Dv) buffer:
        # write that buffer directly from the kernel; the reshape below is free.
        out_shape = jax.ShapeDtypeStruct((B, H, L, Dv), out_dtype)
        out_spec = pl.BlockSpec((1, H, tL, Dv), lambda b, l, s: (b, 0, l, 0))
    else:
        # mix=False: natural head concat -> one lane-dense (tL, H*Dv) slab per L-tile.
        out_shape = jax.ShapeDtypeStruct((B, L, H * Dv), out_dtype)
        out_spec = pl.BlockSpec((1, tL, H * Dv), lambda b, l, s: (b, l, 0))

    scratch_shapes = [
        pltpu.VMEM((H, tL, 1), jnp.float32),      # running max
        pltpu.VMEM((H, tL, 1), jnp.float32),      # running (unmasked) denominator
        pltpu.VMEM((H, tL, Dv), jnp.float32),     # output accumulator
    ]

    # VMEM budget derived from the chosen tiles (double-buffered pipeline + scratch).
    isz = jnp.dtype(out_dtype).itemsize
    blk = (tL * Dm + tS * Dm + tS * Dmv + H * tL * Dv) * isz
    if mask is not None:
        blk += tL * tS * 4
    scratch = (2 * H * tL + H * tL * Dv) * 4
    vmem_limit = int(min(64 * 2**20, max(32 * 2**20, 3 * (2 * blk + scratch))))

    kernel = functools.partial(_flash_cross_attn_kernel, scale=scale, n_heads=H,
                               has_mask=mask is not None, mix=mix)

    out = pl.pallas_call(
        kernel,
        out_shape=out_shape,
        grid=(B, nL, nS),
        in_specs=in_specs,
        out_specs=out_spec,
        scratch_shapes=scratch_shapes,
        compiler_params=pltpu.CompilerParams(
            dimension_semantics=("parallel", "parallel", "arbitrary"),
            vmem_limit_bytes=vmem_limit),
    )(*args)

    if mix:
        return out.reshape(B, L, H * Dv)          # free row-major reinterpretation
    return out


# ------------------------------------------------------------------------------ reference

def cross_attention_ref(queries, keys, values, n_heads, mask=None, mix=True):
    B, L, Dm = queries.shape
    S = keys.shape[1]
    H = n_heads
    E = Dm // H
    Dv = values.shape[-1] // H
    q = queries.reshape(B, L, H, E)
    k = keys.reshape(B, S, H, E)
    v = values.reshape(B, S, H, Dv)
    scores = jnp.einsum('blhe,bshe->bhls', q, k)
    A = jax.nn.softmax(scores / math.sqrt(E), axis=-1)
    if mask is not None:
        A = A * mask
    V = jnp.einsum('bhls,bshd->blhd', A, v)
    if mix:
        V = jnp.transpose(V, (0, 2, 1, 3))        # (B, H, L, Dv) contiguous
    return V.reshape(B, L, H * Dv)


# ----------------------------------------------------------------------------------- main

if __name__ == "__main__":
    # --- case 1: tiny shapes, single tile per program --------------------------------
    B, L, S, Dm, H = 2, 8, 16, 32, 4
    kq, kk, kv, km = jax.random.split(jax.random.PRNGKey(0), 4)
    q = jax.random.normal(kq, (B, L, Dm), jnp.float32)
    k = jax.random.normal(kk, (B, S, Dm), jnp.float32)
    v = jax.random.normal(kv, (B, S, Dm), jnp.float32)
    mask = (jax.random.uniform(km, (L, S)) > 0.3).astype(jnp.float32)

    out = jax.jit(lambda a, b, c: cross_attention(a, b, c, n_heads=H, mix=True))(q, k, v)
    out_m = jax.jit(lambda a, b, c, m: cross_attention(
        a, b, c, n_heads=H, mask=m, mix=True))(q, k, v, mask)
    out_nm = jax.jit(lambda a, b, c, m: cross_attention(
        a, b, c, n_heads=H, mask=m, mix=False))(q, k, v, mask)
    jax.block_until_ready((out, out_m, out_nm))

    assert out.shape == (B, L, Dm), out.shape
    assert bool(jnp.all(jnp.isfinite(out))) and bool(jnp.all(jnp.isfinite(out_m)))
    ref = cross_attention_ref(q, k, v, H, mask=None, mix=True)
    ref_m = cross_attention_ref(q, k, v, H, mask=mask, mix=True)
    ref_nm = cross_attention_ref(q, k, v, H, mask=mask, mix=False)
    # approx-reciprocal softmax -> small tolerance vs exact reference
    assert float(jnp.max(jnp.abs(out - ref))) < 1e-2
    assert float(jnp.max(jnp.abs(out_m - ref_m))) < 1e-2
    assert float(jnp.max(jnp.abs(out_nm - ref_nm))) < 1e-2

    # --- case 2: multi-tile grid exercising the online softmax (L and S both tiled) ---
    B2, L2, S2, Dm2, H2 = 1, 16, 256, 32, 4
    kq2, kk2, kv2, km2 = jax.random.split(jax.random.PRNGKey(1), 4)
    q2 = jax.random.normal(kq2, (B2, L2, Dm2), jnp.float32)
    k2 = jax.random.normal(kk2, (B2, S2, Dm2), jnp.float32)
    v2 = jax.random.normal(kv2, (B2, S2, Dm2), jnp.float32)
    mask2 = (jax.random.uniform(km2, (L2, S2)) > 0.3).astype(jnp.float32)

    out2 = jax.jit(lambda a, b, c, m: cross_attention(
        a, b, c, n_heads=H2, mask=m, mix=True, block_l=8, block_s=128))(q2, k2, v2, mask2)
    jax.block_until_ready(out2)
    ref2 = cross_attention_ref(q2, k2, v2, H2, mask=mask2, mix=True)
    assert out2.shape == (B2, L2, Dm2), out2.shape
    assert float(jnp.max(jnp.abs(out2 - ref2))) < 1e-2

    print("KERNEL_OK")
</pallas_src>

<mosaic_0001>
module attributes {stable_mosaic.version = 11 : i64} {
  func.func @_flash_cross_attn_kernel(%arg0: i32, %arg1: i32, %arg2: i32, %arg3: memref<1x8x32xf32, #tpu.memory_space<vmem>>, %arg4: memref<1x16x32xf32, #tpu.memory_space<vmem>>, %arg5: memref<1x16x32xf32, #tpu.memory_space<vmem>>, %arg6: memref<1x4x8x8xf32, #tpu.memory_space<vmem>>, %arg7: memref<4x8x1xf32, #tpu.memory_space<vmem>>, %arg8: memref<4x8x1xf32, #tpu.memory_space<vmem>>, %arg9: memref<4x8x8xf32, #tpu.memory_space<vmem>>) attributes {dimension_semantics = [#tpu.dimension_semantics<parallel>, #tpu.dimension_semantics<parallel>, #tpu.dimension_semantics<arbitrary>], iteration_bounds = array<i64: 2, 1, 1>, scalar_prefetch = 0 : i64, scratch_operands = 3 : i64, tpu.core_type = #tpu.core_type<tc>, window_params = [{transform_indices = @transform_0, window_bounds = array<i64: 1, 8, 32>}, {transform_indices = @transform_1, window_bounds = array<i64: 1, 16, 32>}, {transform_indices = @transform_2, window_bounds = array<i64: 1, 16, 32>}, {transform_indices = @transform_3, window_bounds = array<i64: 1, 4, 8, 8>}]} {
    %c0_i32 = arith.constant 0 : i32
    %0 = arith.cmpi eq, %arg2, %c0_i32 : i32
    %1 = arith.extui %0 : i1 to i32
    %c0_i32_0 = arith.constant 0 : i32
    %2 = arith.cmpi ne, %1, %c0_i32_0 : i32
    scf.if %2 {
      %cst_99 = arith.constant 0xFF800000 : f32
      %160 = vector.broadcast %cst_99 : f32 to vector<4x8x1xf32>
      %c0_100 = arith.constant 0 : index
      %c0_101 = arith.constant 0 : index
      %c0_102 = arith.constant 0 : index
      %161 = vector.load %arg7[%c0_100, %c0_101, %c0_102] : memref<4x8x1xf32, #tpu.memory_space<vmem>>, vector<4x8x1xf32>
      tpu.vector_store %arg7[%c0_100, %c0_101, %c0_102], %160 {strides = array<i32>} : memref<4x8x1xf32, #tpu.memory_space<vmem>>, vector<4x8x1xf32>,
      %cst_103 = arith.constant 0.000000e+00 : f32
      %162 = vector.broadcast %cst_103 : f32 to vector<4x8x1xf32>
      %c0_104 = arith.constant 0 : index
      %c0_105 = arith.constant 0 : index
      %c0_106 = arith.constant 0 : index
      %163 = vector.load %arg8[%c0_104, %c0_105, %c0_106] : memref<4x8x1xf32, #tpu.memory_space<vmem>>, vector<4x8x1xf32>
      tpu.vector_store %arg8[%c0_104, %c0_105, %c0_106], %162 {strides = array<i32>} : memref<4x8x1xf32, #tpu.memory_space<vmem>>, vector<4x8x1xf32>,
      %cst_107 = arith.constant 0.000000e+00 : f32
      %164 = vector.broadcast %cst_107 : f32 to vector<4x8x8xf32>
      %c0_108 = arith.constant 0 : index
      %c0_109 = arith.constant 0 : index
      %c0_110 = arith.constant 0 : index
      %165 = vector.load %arg9[%c0_108, %c0_109, %c0_110] : memref<4x8x8xf32, #tpu.memory_space<vmem>>, vector<4x8x8xf32>
      tpu.vector_store %arg9[%c0_108, %c0_109, %c0_110], %164 {strides = array<i32>} : memref<4x8x8xf32, #tpu.memory_space<vmem>>, vector<4x8x8xf32>,
    } else {
    }
    %c0 = arith.constant 0 : index
    %c0_1 = arith.constant 0 : index
    %c0_2 = arith.constant 0 : index
    %3 = vector.load %arg3[%c0, %c0_1, %c0_2] : memref<1x8x32xf32, #tpu.memory_space<vmem>>, vector<1x8x32xf32>
    %4 = vector.shape_cast %3 : vector<1x8x32xf32> to vector<8x32xf32>
    %c0_3 = arith.constant 0 : index
    %c0_4 = arith.constant 0 : index
    %c0_5 = arith.constant 0 : index
    %5 = vector.load %arg4[%c0_3, %c0_4, %c0_5] : memref<1x16x32xf32, #tpu.memory_space<vmem>>, vector<1x16x32xf32>
    %6 = vector.shape_cast %5 : vector<1x16x32xf32> to vector<16x32xf32>
    %c0_6 = arith.constant 0 : index
    %c0_7 = arith.constant 0 : index
    %c0_8 = arith.constant 0 : index
    %7 = vector.load %arg5[%c0_6, %c0_7, %c0_8] : memref<1x16x32xf32, #tpu.memory_space<vmem>>, vector<1x16x32xf32>
    %8 = vector.shape_cast %7 : vector<1x16x32xf32> to vector<16x32xf32>
    %9 = vector.extract_strided_slice %4 {offsets = [0, 0], sizes = [8, 8], strides = [1, 1]} : vector<8x32xf32> to vector<8x8xf32>
    %10 = vector.extract_strided_slice %6 {offsets = [0, 0], sizes = [16, 8], strides = [1, 1]} : vector<16x32xf32> to vector<16x8xf32>
    %11 = vector.extract_strided_slice %8 {offsets = [0, 0], sizes = [16, 8], strides = [1, 1]} : vector<16x32xf32> to vector<16x8xf32>
    %cst = arith.constant dense<0.000000e+00> : vector<8x16xf32>
    %12 = tpu.matmul %9, %10, %cst {dimension_numbers = #tpu.dot_dimension_numbers<[1], [1], [0], [0], [0, 0, 1, 0], [], []>} : vector<8x8xf32>, vector<16x8xf32>, vector<8x16xf32> -> vector<8x16xf32>
    %cst_9 = arith.constant 0.353553385 : f32
    %13 = vector.broadcast %cst_9 : f32 to vector<8x16xf32>
    %14 = arith.mulf %12, %13 : vector<8x16xf32>
    %c0_10 = arith.constant 0 : index
    %c0_11 = arith.constant 0 : index
    %c0_12 = arith.constant 0 : index
    %15 = vector.load %arg7[%c0_10, %c0_11, %c0_12] : memref<4x8x1xf32, #tpu.memory_space<vmem>>, vector<1x8x1xf32>
    %16 = vector.shape_cast %15 : vector<1x8x1xf32> to vector<8x1xf32>
    %cst_13 = arith.constant dense<0xFF800000> : vector<8xf32>
    %17 = vector.multi_reduction <maximumf>, %14, %cst_13 [1] : vector<8x16xf32> to vector<8xf32>
    %18 = vector.shape_cast %17 : vector<8xf32> to vector<8x1xf32>
    %19 = arith.maximumf %16, %18 : vector<8x1xf32>
    %20 = arith.subf %16, %19 : vector<8x1xf32>
    %21 = math.exp %20 : vector<8x1xf32>
    %22 = vector.broadcast %19 : vector<8x1xf32> to vector<8x16xf32>
    %23 = arith.subf %14, %22 : vector<8x16xf32>
    %24 = math.exp %23 : vector<8x16xf32>
    %c0_14 = arith.constant 0 : index
    %c0_15 = arith.constant 0 : index
    %c0_16 = arith.constant 0 : index
    %25 = vector.load %arg8[%c0_14, %c0_15, %c0_16] : memref<4x8x1xf32, #tpu.memory_space<vmem>>, vector<1x8x1xf32>
    %26 = vector.shape_cast %25 : vector<1x8x1xf32> to vector<8x1xf32>
    %27 = arith.mulf %21, %26 : vector<8x1xf32>
    %cst_17 = arith.constant dense<0.000000e+00> : vector<8xf32>
    %28 = vector.multi_reduction <add>, %24, %cst_17 [1] : vector<8x16xf32> to vector<8xf32>
    %29 = vector.shape_cast %28 : vector<8xf32> to vector<8x1xf32>
    %30 = arith.addf %27, %29 : vector<8x1xf32>
    %c0_18 = arith.constant 0 : index
    %c0_19 = arith.constant 0 : index
    %c0_20 = arith.constant 0 : index
    %31 = vector.load %arg8[%c0_18, %c0_19, %c0_20] : memref<4x8x1xf32, #tpu.memory_space<vmem>>, vector<1x8x1xf32>
    %32 = vector.shape_cast %31 : vector<1x8x1xf32> to vector<8x1xf32>
    %33 = vector.shape_cast %30 : vector<8x1xf32> to vector<1x8x1xf32>
    tpu.vector_store %arg8[%c0_18, %c0_19, %c0_20], %33 {strides = array<i32>} : memref<4x8x1xf32, #tpu.memory_space<vmem>>, vector<1x8x1xf32>,
    %c0_21 = arith.constant 0 : index
    %c0_22 = arith.constant 0 : index
    %c0_23 = arith.constant 0 : index
    %34 = vector.load %arg7[%c0_21, %c0_22, %c0_23] : memref<4x8x1xf32, #tpu.memory_space<vmem>>, vector<1x8x1xf32>
    %35 = vector.shape_cast %34 : vector<1x8x1xf32> to vector<8x1xf32>
    %36 = vector.shape_cast %19 : vector<8x1xf32> to vector<1x8x1xf32>
    tpu.vector_store %arg7[%c0_21, %c0_22, %c0_23], %36 {strides = array<i32>} : memref<4x8x1xf32, #tpu.memory_space<vmem>>, vector<1x8x1xf32>,
    %c0_24 = arith.constant 0 : index
    %c0_25 = arith.constant 0 : index
    %c0_26 = arith.constant 0 : index
    %37 = vector.load %arg9[%c0_24, %c0_25, %c0_26] : memref<4x8x8xf32, #tpu.memory_space<vmem>>, vector<1x8x8xf32>
    %38 = vector.shape_cast %37 : vector<1x8x8xf32> to vector<8x8xf32>
    %39 = vector.broadcast %21 : vector<8x1xf32> to vector<8x8xf32>
    %40 = arith.mulf %39, %38 : vector<8x8xf32>
    %cst_27 = arith.constant dense<0.000000e+00> : vector<8x8xf32>
    %41 = tpu.matmul %24, %11, %cst_27 {dimension_numbers = #tpu.dot_dimension_numbers<[1], [0], [0], [1], [0, 0, 1, 1], [], []>} : vector<8x16xf32>, vector<16x8xf32>, vector<8x8xf32> -> vector<8x8xf32>
    %42 = arith.addf %40, %41 : vector<8x8xf32>
    %c0_28 = arith.constant 0 : index
    %c0_29 = arith.constant 0 : index
    %c0_30 = arith.constant 0 : index
    %43 = vector.load %arg9[%c0_28, %c0_29, %c0_30] : memref<4x8x8xf32, #tpu.memory_space<vmem>>, vector<1x8x8xf32>
    %44 = vector.shape_cast %43 : vector<1x8x8xf32> to vector<8x8xf32>
    %45 = vector.shape_cast %42 : vector<8x8xf32> to vector<1x8x8xf32>
    tpu.vector_store %arg9[%c0_28, %c0_29, %c0_30], %45 {strides = array<i32>} : memref<4x8x8xf32, #tpu.memory_space<vmem>>, vector<1x8x8xf32>,
    %46 = vector.extract_strided_slice %4 {offsets = [0, 8], sizes = [8, 8], strides = [1, 1]} : vector<8x32xf32> to vector<8x8xf32>
    %47 = vector.extract_strided_slice %6 {offsets = [0, 8], sizes = [16, 8], strides = [1, 1]} : vector<16x32xf32> to vector<16x8xf32>
    %48 = vector.extract_strided_slice %8 {offsets = [0, 8], sizes = [16, 8], strides = [1, 1]} : vector<16x32xf32> to vector<16x8xf32>
    %cst_31 = arith.constant dense<0.000000e+00> : vector<8x16xf32>
    %49 = tpu.matmul %46, %47, %cst_31 {dimension_numbers = #tpu.dot_dimension_numbers<[1], [1], [0], [0], [0, 0, 1, 0], [], []>} : vector<8x8xf32>, vector<16x8xf32>, vector<8x16xf32> -> vector<8x16xf32>
    %cst_32 = arith.constant 0.353553385 : f32
    %50 = vector.broadcast %cst_32 : f32 to vector<8x16xf32>
    %51 = arith.mulf %49, %50 : vector<8x16xf32>
    %c1 = arith.constant 1 : index
    %c0_33 = arith.constant 0 : index
    %c0_34 = arith.constant 0 : index
    %52 = vector.load %arg7[%c1, %c0_33, %c0_34] : memref<4x8x1xf32, #tpu.memory_space<vmem>>, vector<1x8x1xf32>
    %53 = vector.shape_cast %52 : vector<1x8x1xf32> to vector<8x1xf32>
    %cst_35 = arith.constant dense<0xFF800000> : vector<8xf32>
    %54 = vector.multi_reduction <maximumf>, %51, %cst_35 [1] : vector<8x16xf32> to vector<8xf32>
    %55 = vector.shape_cast %54 : vector<8xf32> to vector<8x1xf32>
    %56 = arith.maximumf %53, %55 : vector<8x1xf32>
    %57 = arith.subf %53, %56 : vector<8x1xf32>
    %58 = math.exp %57 : vector<8x1xf32>
    %59 = vector.broadcast %56 : vector<8x1xf32> to vector<8x16xf32>
    %60 = arith.subf %51, %59 : vector<8x16xf32>
    %61 = math.exp %60 : vector<8x16xf32>
    %c1_36 = arith.constant 1 : index
    %c0_37 = arith.constant 0 : index
    %c0_38 = arith.constant 0 : index
    %62 = vector.load %arg8[%c1_36, %c0_37, %c0_38] : memref<4x8x1xf32, #tpu.memory_space<vmem>>, vector<1x8x1xf32>
    %63 = vector.shape_cast %62 : vector<1x8x1xf32> to vector<8x1xf32>
    %64 = arith.mulf %58, %63 : vector<8x1xf32>
    %cst_39 = arith.constant dense<0.000000e+00> : vector<8xf32>
    %65 = vector.multi_reduction <add>, %61, %cst_39 [1] : vector<8x16xf32> to vector<8xf32>
    %66 = vector.shape_cast %65 : vector<8xf32> to vector<8x1xf32>
    %67 = arith.addf %64, %66 : vector<8x1xf32>
    %c1_40 = arith.constant 1 : index
    %c0_41 = arith.constant 0 : index
    %c0_42 = arith.constant 0 : index
    %68 = vector.load %arg8[%c1_40, %c0_41, %c0_42] : memref<4x8x1xf32, #tpu.memory_space<vmem>>, vector<1x8x1xf32>
    %69 = vector.shape_cast %68 : vector<1x8x1xf32> to vector<8x1xf32>
    %70 = vector.shape_cast %67 : vector<8x1xf32> to vector<1x8x1xf32>
    tpu.vector_store %arg8[%c1_40, %c0_41, %c0_42], %70 {strides = array<i32>} : memref<4x8x1xf32, #tpu.memory_space<vmem>>, vector<1x8x1xf32>,
    %c1_43 = arith.constant 1 : index
    %c0_44 = arith.constant 0 : index
    %c0_45 = arith.constant 0 : index
    %71 = vector.load %arg7[%c1_43, %c0_44, %c0_45] : memref<4x8x1xf32, #tpu.memory_space<vmem>>, vector<1x8x1xf32>
    %72 = vector.shape_cast %71 : vector<1x8x1xf32> to vector<8x1xf32>
    %73 = vector.shape_cast %56 : vector<8x1xf32> to vector<1x8x1xf32>
    tpu.vector_store %arg7[%c1_43, %c0_44, %c0_45], %73 {strides = array<i32>} : memref<4x8x1xf32, #tpu.memory_space<vmem>>, vector<1x8x1xf32>,
    %c1_46 = arith.constant 1 : index
    %c0_47 = arith.constant 0 : index
    %c0_48 = arith.constant 0 : index
    %74 = vector.load %arg9[%c1_46, %c0_47, %c0_48] : memref<4x8x8xf32, #tpu.memory_space<vmem>>, vector<1x8x8xf32>
    %75 = vector.shape_cast %74 : vector<1x8x8xf32> to vector<8x8xf32>
    %76 = vector.broadcast %58 : vector<8x1xf32> to vector<8x8xf32>
    %77 = arith.mulf %76, %75 : vector<8x8xf32>
    %cst_49 = arith.constant dense<0.000000e+00> : vector<8x8xf32>
    %78 = tpu.matmul %61, %48, %cst_49 {dimension_numbers = #tpu.dot_dimension_numbers<[1], [0], [0], [1], [0, 0, 1, 1], [], []>} : vector<8x16xf32>, vector<16x8xf32>, vector<8x8xf32> -> vector<8x8xf32>
    %79 = arith.addf %77, %78 : vector<8x8xf32>
    %c1_50 = arith.constant 1 : index
    %c0_51 = arith.constant 0 : index
    %c0_52 = arith.constant 0 : index
    %80 = vector.load %arg9[%c1_50, %c0_51, %c0_52] : memref<4x8x8xf32, #tpu.memory_space<vmem>>, vector<1x8x8xf32>
    %81 = vector.shape_cast %80 : vector<1x8x8xf32> to vector<8x8xf32>
    %82 = vector.shape_cast %79 : vector<8x8xf32> to vector<1x8x8xf32>
    tpu.vector_store %arg9[%c1_50, %c0_51, %c0_52], %82 {strides = array<i32>} : memref<4x8x8xf32, #tpu.memory_space<vmem>>, vector<1x8x8xf32>,
    %83 = vector.extract_strided_slice %4 {offsets = [0, 16], sizes = [8, 8], strides = [1, 1]} : vector<8x32xf32> to vector<8x8xf32>
    %84 = vector.extract_strided_slice %6 {offsets = [0, 16], sizes = [16, 8], strides = [1, 1]} : vector<16x32xf32> to vector<16x8xf32>
    %85 = vector.extract_strided_slice %8 {offsets = [0, 16], sizes = [16, 8], strides = [1, 1]} : vector<16x32xf32> to vector<16x8xf32>
    %cst_53 = arith.constant dense<0.000000e+00> : vector<8x16xf32>
    %86 = tpu.matmul %83, %84, %cst_53 {dimension_numbers = #tpu.dot_dimension_numbers<[1], [1], [0], [0], [0, 0, 1, 0], [], []>} : vector<8x8xf32>, vector<16x8xf32>, vector<8x16xf32> -> vector<8x16xf32>
    %cst_54 = arith.constant 0.353553385 : f32
    %87 = vector.broadcast %cst_54 : f32 to vector<8x16xf32>
    %88 = arith.mulf %86, %87 : vector<8x16xf32>
    %c2 = arith.constant 2 : index
    %c0_55 = arith.constant 0 : index
    %c0_56 = arith.constant 0 : index
    %89 = vector.load %arg7[%c2, %c0_55, %c0_56] : memref<4x8x1xf32, #tpu.memory_space<vmem>>, vector<1x8x1xf32>
    %90 = vector.shape_cast %89 : vector<1x8x1xf32> to vector<8x1xf32>
    %cst_57 = arith.constant dense<0xFF800000> : vector<8xf32>
    %91 = vector.multi_reduction <maximumf>, %88, %cst_57 [1] : vector<8x16xf32> to vector<8xf32>
    %92 = vector.shape_cast %91 : vector<8xf32> to vector<8x1xf32>
    %93 = arith.maximumf %90, %92 : vector<8x1xf32>
    %94 = arith.subf %90, %93 : vector<8x1xf32>
    %95 = math.exp %94 : vector<8x1xf32>
    %96 = vector.broadcast %93 : vector<8x1xf32> to vector<8x16xf32>
    %97 = arith.subf %88, %96 : vector<8x16xf32>
    %98 = math.exp %97 : vector<8x16xf32>
    %c2_58 = arith.constant 2 : index
    %c0_59 = arith.constant 0 : index
    %c0_60 = arith.constant 0 : index
    %99 = vector.load %arg8[%c2_58, %c0_59, %c0_60] : memref<4x8x1xf32, #tpu.memory_space<vmem>>, vector<1x8x1xf32>
    %100 = vector.shape_cast %99 : vector<1x8x1xf32> to vector<8x1xf32>
    %101 = arith.mulf %95, %100 : vector<8x1xf32>
    %cst_61 = arith.constant dense<0.000000e+00> : vector<8xf32>
    %102 = vector.multi_reduction <add>, %98, %cst_61 [1] : vector<8x16xf32> to vector<8xf32>
    %103 = vector.shape_cast %102 : vector<8xf32> to vector<8x1xf32>
    %104 = arith.addf %101, %103 : vector<8x1xf32>
    %c2_62 = arith.constant 2 : index
    %c0_63 = arith.constant 0 : index
    %c0_64 = arith.constant 0 : index
    %105 = vector.load %arg8[%c2_62, %c0_63, %c0_64] : memref<4x8x1xf32, #tpu.memory_space<vmem>>, vector<1x8x1xf32>
    %106 = vector.shape_cast %105 : vector<1x8x1xf32> to vector<8x1xf32>
    %107 = vector.shape_cast %104 : vector<8x1xf32> to vector<1x8x1xf32>
    tpu.vector_store %arg8[%c2_62, %c0_63, %c0_64], %107 {strides = array<i32>} : memref<4x8x1xf32, #tpu.memory_space<vmem>>, vector<1x8x1xf32>,
    %c2_65 = arith.constant 2 : index
    %c0_66 = arith.constant 0 : index
    %c0_67 = arith.constant 0 : index
    %108 = vector.load %arg7[%c2_65, %c0_66, %c0_67] : memref<4x8x1xf32, #tpu.memory_space<vmem>>, vector<1x8x1xf32>
    %109 = vector.shape_cast %108 : vector<1x8x1xf32> to vector<8x1xf32>
    %110 = vector.shape_cast %93 : vector<8x1xf32> to vector<1x8x1xf32>
    tpu.vector_store %arg7[%c2_65, %c0_66, %c0_67], %110 {strides = array<i32>} : memref<4x8x1xf32, #tpu.memory_space<vmem>>, vector<1x8x1xf32>,
    %c2_68 = arith.constant 2 : index
    %c0_69 = arith.constant 0 : index
    %c0_70 = arith.constant 0 : index
    %111 = vector.load %arg9[%c2_68, %c0_69, %c0_70] : memref<4x8x8xf32, #tpu.memory_space<vmem>>, vector<1x8x8xf32>
    %112 = vector.shape_cast %111 : vector<1x8x8xf32> to vector<8x8xf32>
    %113 = vector.broadcast %95 : vector<8x1xf32> to vector<8x8xf32>
    %114 = arith.mulf %113, %112 : vector<8x8xf32>
    %cst_71 = arith.constant dense<0.000000e+00> : vector<8x8xf32>
    %115 = tpu.matmul %98, %85, %cst_71 {dimension_numbers = #tpu.dot_dimension_numbers<[1], [0], [0], [1], [0, 0, 1, 1], [], []>} : vector<8x16xf32>, vector<16x8xf32>, vector<8x8xf32> -> vector<8x8xf32>
    %116 = arith.addf %114, %115 : vector<8x8xf32>
    %c2_72 = arith.constant 2 : index
    %c0_73 = arith.constant 0 : index
    %c0_74 = arith.constant 0 : index
    %117 = vector.load %arg9[%c2_72, %c0_73, %c0_74] : memref<4x8x8xf32, #tpu.memory_space<vmem>>, vector<1x8x8xf32>
    %118 = vector.shape_cast %117 : vector<1x8x8xf32> to vector<8x8xf32>
    %119 = vector.shape_cast %116 : vector<8x8xf32> to vector<1x8x8xf32>
    tpu.vector_store %arg9[%c2_72, %c0_73, %c0_74], %119 {strides = array<i32>} : memref<4x8x8xf32, #tpu.memory_space<vmem>>, vector<1x8x8xf32>,
    %120 = vector.extract_strided_slice %4 {offsets = [0, 24], sizes = [8, 8], strides = [1, 1]} : vector<8x32xf32> to vector<8x8xf32>
    %121 = vector.extract_strided_slice %6 {offsets = [0, 24], sizes = [16, 8], strides = [1, 1]} : vector<16x32xf32> to vector<16x8xf32>
    %122 = vector.extract_strided_slice %8 {offsets = [0, 24], sizes = [16, 8], strides = [1, 1]} : vector<16x32xf32> to vector<16x8xf32>
    %cst_75 = arith.constant dense<0.000000e+00> : vector<8x16xf32>
    %123 = tpu.matmul %120, %121, %cst_75 {dimension_numbers = #tpu.dot_dimension_numbers<[1], [1], [0], [0], [0, 0, 1, 0], [], []>} : vector<8x8xf32>, vector<16x8xf32>, vector<8x16xf32> -> vector<8x16xf32>
    %cst_76 = arith.constant 0.353553385 : f32
    %124 = vector.broadcast %cst_76 : f32 to vector<8x16xf32>
    %125 = arith.mulf %123, %124 : vector<8x16xf32>
    %c3 = arith.constant 3 : index
    %c0_77 = arith.constant 0 : index
    %c0_78 = arith.constant 0 : index
    %126 = vector.load %arg7[%c3, %c0_77, %c0_78] : memref<4x8x1xf32, #tpu.memory_space<vmem>>, vector<1x8x1xf32>
    %127 = vector.shape_cast %126 : vector<1x8x1xf32> to vector<8x1xf32>
    %cst_79 = arith.constant dense<0xFF800000> : vector<8xf32>
    %128 = vector.multi_reduction <maximumf>, %125, %cst_79 [1] : vector<8x16xf32> to vector<8xf32>
    %129 = vector.shape_cast %128 : vector<8xf32> to vector<8x1xf32>
    %130 = arith.maximumf %127, %129 : vector<8x1xf32>
    %131 = arith.subf %127, %130 : vector<8x1xf32>
    %132 = math.exp %131 : vector<8x1xf32>
    %133 = vector.broadcast %130 : vector<8x1xf32> to vector<8x16xf32>
    %134 = arith.subf %125, %133 : vector<8x16xf32>
    %135 = math.exp %134 : vector<8x16xf32>
    %c3_80 = arith.constant 3 : index
    %c0_81 = arith.constant 0 : index
    %c0_82 = arith.constant 0 : index
    %136 = vector.load %arg8[%c3_80, %c0_81, %c0_82] : memref<4x8x1xf32, #tpu.memory_space<vmem>>, vector<1x8x1xf32>
    %137 = vector.shape_cast %136 : vector<1x8x1xf32> to vector<8x1xf32>
    %138 = arith.mulf %132, %137 : vector<8x1xf32>
    %cst_83 = arith.constant dense<0.000000e+00> : vector<8xf32>
    %139 = vector.multi_reduction <add>, %135, %cst_83 [1] : vector<8x16xf32> to vector<8xf32>
    %140 = vector.shape_cast %139 : vector<8xf32> to vector<8x1xf32>
    %141 = arith.addf %138, %140 : vector<8x1xf32>
    %c3_84 = arith.constant 3 : index
    %c0_85 = arith.constant 0 : index
    %c0_86 = arith.constant 0 : index
    %142 = vector.load %arg8[%c3_84, %c0_85, %c0_86] : memref<4x8x1xf32, #tpu.memory_space<vmem>>, vector<1x8x1xf32>
    %143 = vector.shape_cast %142 : vector<1x8x1xf32> to vector<8x1xf32>
    %144 = vector.shape_cast %141 : vector<8x1xf32> to vector<1x8x1xf32>
    tpu.vector_store %arg8[%c3_84, %c0_85, %c0_86], %144 {strides = array<i32>} : memref<4x8x1xf32, #tpu.memory_space<vmem>>, vector<1x8x1xf32>,
    %c3_87 = arith.constant 3 : index
    %c0_88 = arith.constant 0 : index
    %c0_89 = arith.constant 0 : index
    %145 = vector.load %arg7[%c3_87, %c0_88, %c0_89] : memref<4x8x1xf32, #tpu.memory_space<vmem>>, vector<1x8x1xf32>
    %146 = vector.shape_cast %145 : vector<1x8x1xf32> to vector<8x1xf32>
    %147 = vector.shape_cast %130 : vector<8x1xf32> to vector<1x8x1xf32>
    tpu.vector_store %arg7[%c3_87, %c0_88, %c0_89], %147 {strides = array<i32>} : memref<4x8x1xf32, #tpu.memory_space<vmem>>, vector<1x8x1xf32>,
    %c3_90 = arith.constant 3 : index
    %c0_91 = arith.constant 0 : index
    %c0_92 = arith.constant 0 : index
    %148 = vector.load %arg9[%c3_90, %c0_91, %c0_92] : memref<4x8x8xf32, #tpu.memory_space<vmem>>, vector<1x8x8xf32>
    %149 = vector.shape_cast %148 : vector<1x8x8xf32> to vector<8x8xf32>
    %150 = vector.broadcast %132 : vector<8x1xf32> to vector<8x8xf32>
    %151 = arith.mulf %150, %149 : vector<8x8xf32>
    %cst_93 = arith.constant dense<0.000000e+00> : vector<8x8xf32>
    %152 = tpu.matmul %135, %122, %cst_93 {dimension_numbers = #tpu.dot_dimension_numbers<[1], [0], [0], [1], [0, 0, 1, 1], [], []>} : vector<8x16xf32>, vector<16x8xf32>, vector<8x8xf32> -> vector<8x8xf32>
    %153 = arith.addf %151, %152 : vector<8x8xf32>
    %c3_94 = arith.constant 3 : index
    %c0_95 = arith.constant 0 : index
    %c0_96 = arith.constant 0 : index
    %154 = vector.load %arg9[%c3_94, %c0_95, %c0_96] : memref<4x8x8xf32, #tpu.memory_space<vmem>>, vector<1x8x8xf32>
    %155 = vector.shape_cast %154 : vector<1x8x8xf32> to vector<8x8xf32>
    %156 = vector.shape_cast %153 : vector<8x8xf32> to vector<1x8x8xf32>
    tpu.vector_store %arg9[%c3_94, %c0_95, %c0_96], %156 {strides = array<i32>} : memref<4x8x8xf32, #tpu.memory_space<vmem>>, vector<1x8x8xf32>,
    %c0_i32_97 = arith.constant 0 : i32
    %157 = arith.cmpi eq, %arg2, %c0_i32_97 : i32
    %158 = arith.extui %157 : i1 to i32
    %c0_i32_98 = arith.constant 0 : i32
    %159 = arith.cmpi ne, %158, %c0_i32_98 : i32
    scf.if %159 {
      %c0_99 = arith.constant 0 : index
      %c0_100 = arith.constant 0 : index
      %c0_101 = arith.constant 0 : index
      %160 = vector.load %arg8[%c0_99, %c0_100, %c0_101] : memref<4x8x1xf32, #tpu.memory_space<vmem>>, vector<1x8x1xf32>
      %161 = vector.shape_cast %160 : vector<1x8x1xf32> to vector<8x1xf32>
      %162 = tpu.reciprocal %161 {approx = true} : vector<8x1xf32> -> vector<8x1xf32>
      %c0_102 = arith.constant 0 : index
      %c0_103 = arith.constant 0 : index
      %c0_104 = arith.constant 0 : index
      %163 = vector.load %arg9[%c0_102, %c0_103, %c0_104] : memref<4x8x8xf32, #tpu.memory_space<vmem>>, vector<1x8x8xf32>
      %164 = vector.shape_cast %163 : vector<1x8x8xf32> to vector<8x8xf32>
      %165 = vector.broadcast %162 : vector<8x1xf32> to vector<8x8xf32>
      %166 = arith.mulf %164, %165 : vector<8x8xf32>
      %c0_105 = arith.constant 0 : index
      %c0_106 = arith.constant 0 : index
      %c0_107 = arith.constant 0 : index
      %c0_108 = arith.constant 0 : index
      %167 = vector.load %arg6[%c0_105, %c0_106, %c0_107, %c0_108] : memref<1x4x8x8xf32, #tpu.memory_space<vmem>>, vector<1x1x8x8xf32>
      %168 = vector.shape_cast %167 : vector<1x1x8x8xf32> to vector<8x8xf32>
      %169 = vector.shape_cast %166 : vector<8x8xf32> to vector<1x1x8x8xf32>
      tpu.vector_store %arg6[%c0_105, %c0_106, %c0_107, %c0_108], %169 {strides = array<i32>} : memref<1x4x8x8xf32, #tpu.memory_space<vmem>>, vector<1x1x8x8xf32>,
      %c1_109 = arith.constant 1 : index
      %c0_110 = arith.constant 0 : index
      %c0_111 = arith.constant 0 : index
      %170 = vector.load %arg8[%c1_109, %c0_110, %c0_111] : memref<4x8x1xf32, #tpu.memory_space<vmem>>, vector<1x8x1xf32>
      %171 = vector.shape_cast %170 : vector<1x8x1xf32> to vector<8x1xf32>
      %172 = tpu.reciprocal %171 {approx = true} : vector<8x1xf32> -> vector<8x1xf32>
      %c1_112 = arith.constant 1 : index
      %c0_113 = arith.constant 0 : index
      %c0_114 = arith.constant 0 : index
      %173 = vector.load %arg9[%c1_112, %c0_113, %c0_114] : memref<4x8x8xf32, #tpu.memory_space<vmem>>, vector<1x8x8xf32>
      %174 = vector.shape_cast %173 : vector<1x8x8xf32> to vector<8x8xf32>
      %175 = vector.broadcast %172 : vector<8x1xf32> to vector<8x8xf32>
      %176 = arith.mulf %174, %175 : vector<8x8xf32>
      %c0_115 = arith.constant 0 : index
      %c1_116 = arith.constant 1 : index
      %c0_117 = arith.constant 0 : index
      %c0_118 = arith.constant 0 : index
      %177 = vector.load %arg6[%c0_115, %c1_116, %c0_117, %c0_118] : memref<1x4x8x8xf32, #tpu.memory_space<vmem>>, vector<1x1x8x8xf32>
      %178 = vector.shape_cast %177 : vector<1x1x8x8xf32> to vector<8x8xf32>
      %179 = vector.shape_cast %176 : vector<8x8xf32> to vector<1x1x8x8xf32>
      tpu.vector_store %arg6[%c0_115, %c1_116, %c0_117, %c0_118], %179 {strides = array<i32>} : memref<1x4x8x8xf32, #tpu.memory_space<vmem>>, vector<1x1x8x8xf32>,
      %c2_119 = arith.constant 2 : index
      %c0_120 = arith.constant 0 : index
      %c0_121 = arith.constant 0 : index
      %180 = vector.load %arg8[%c2_119, %c0_120, %c0_121] : memref<4x8x1xf32, #tpu.memory_space<vmem>>, vector<1x8x1xf32>
      %181 = vector.shape_cast %180 : vector<1x8x1xf32> to vector<8x1xf32>
      %182 = tpu.reciprocal %181 {approx = true} : vector<8x1xf32> -> vector<8x1xf32>
      %c2_122 = arith.constant 2 : index
      %c0_123 = arith.constant 0 : index
      %c0_124 = arith.constant 0 : index
      %183 = vector.load %arg9[%c2_122, %c0_123, %c0_124] : memref<4x8x8xf32, #tpu.memory_space<vmem>>, vector<1x8x8xf32>
      %184 = vector.shape_cast %183 : vector<1x8x8xf32> to vector<8x8xf32>
      %185 = vector.broadcast %182 : vector<8x1xf32> to vector<8x8xf32>
      %186 = arith.mulf %184, %185 : vector<8x8xf32>
      %c0_125 = arith.constant 0 : index
      %c2_126 = arith.constant 2 : index
      %c0_127 = arith.constant 0 : index
      %c0_128 = arith.constant 0 : index
      %187 = vector.load %arg6[%c0_125, %c2_126, %c0_127, %c0_128] : memref<1x4x8x8xf32, #tpu.memory_space<vmem>>, vector<1x1x8x8xf32>
      %188 = vector.shape_cast %187 : vector<1x1x8x8xf32> to vector<8x8xf32>
      %189 = vector.shape_cast %186 : vector<8x8xf32> to vector<1x1x8x8xf32>
      tpu.vector_store %arg6[%c0_125, %c2_126, %c0_127, %c0_128], %189 {strides = array<i32>} : memref<1x4x8x8xf32, #tpu.memory_space<vmem>>, vector<1x1x8x8xf32>,
      %c3_129 = arith.constant 3 : index
      %c0_130 = arith.constant 0 : index
      %c0_131 = arith.constant 0 : index
      %190 = vector.load %arg8[%c3_129, %c0_130, %c0_131] : memref<4x8x1xf32, #tpu.memory_space<vmem>>, vector<1x8x1xf32>
      %191 = vector.shape_cast %190 : vector<1x8x1xf32> to vector<8x1xf32>
      %192 = tpu.reciprocal %191 {approx = true} : vector<8x1xf32> -> vector<8x1xf32>
      %c3_132 = arith.constant 3 : index
      %c0_133 = arith.constant 0 : index
      %c0_134 = arith.constant 0 : index
      %193 = vector.load %arg9[%c3_132, %c0_133, %c0_134] : memref<4x8x8xf32, #tpu.memory_space<vmem>>, vector<1x8x8xf32>
      %194 = vector.shape_cast %193 : vector<1x8x8xf32> to vector<8x8xf32>
      %195 = vector.broadcast %192 : vector<8x1xf32> to vector<8x8xf32>
      %196 = arith.mulf %194, %195 : vector<8x8xf32>
      %c0_135 = arith.constant 0 : index
      %c3_136 = arith.constant 3 : index
      %c0_137 = arith.constant 0 : index
      %c0_138 = arith.constant 0 : index
      %197 = vector.load %arg6[%c0_135, %c3_136, %c0_137, %c0_138] : memref<1x4x8x8xf32, #tpu.memory_space<vmem>>, vector<1x1x8x8xf32>
      %198 = vector.shape_cast %197 : vector<1x1x8x8xf32> to vector<8x8xf32>
      %199 = vector.shape_cast %196 : vector<8x8xf32> to vector<1x1x8x8xf32>
      tpu.vector_store %arg6[%c0_135, %c3_136, %c0_137, %c0_138], %199 {strides = array<i32>} : memref<1x4x8x8xf32, #tpu.memory_space<vmem>>, vector<1x1x8x8xf32>,
    } else {
    }
    return
  }
  func.func @transform_0(%arg0: i32, %arg1: i32, %arg2: i32) -> (i32, i32, i32) {
    %c0_i32 = arith.constant 0 : i32
    %c0_i32_0 = arith.constant 0 : i32
    return %arg0, %arg1, %c0_i32 : i32, i32, i32
  }
  func.func @transform_1(%arg0: i32, %arg1: i32, %arg2: i32) -> (i32, i32, i32) {
    %c0_i32 = arith.constant 0 : i32
    %c0_i32_0 = arith.constant 0 : i32
    return %arg0, %arg2, %c0_i32 : i32, i32, i32
  }
  func.func @transform_2(%arg0: i32, %arg1: i32, %arg2: i32) -> (i32, i32, i32) {
    %c0_i32 = arith.constant 0 : i32
    %c0_i32_0 = arith.constant 0 : i32
    return %arg0, %arg2, %c0_i32 : i32, i32, i32
  }
  func.func @transform_3(%arg0: i32, %arg1: i32, %arg2: i32) -> (i32, i32, i32, i32) {
    %c0_i32 = arith.constant 0 : i32
    %c0_i32_0 = arith.constant 0 : i32
    %c0_i32_1 = arith.constant 0 : i32
    return %arg0, %c0_i32, %arg1, %c0_i32_0 : i32, i32, i32, i32
  }
}

</mosaic_0001>

<llo_original>
// kernel: _lambda_.1
$region0: #{_lambda_.1}
  #allocation0 [shape = 'u32[]', space=smem, size = 0x4, offset = 0x4, fixed_abs, tag = 'smem constant byte address 0x4 - core index']
  #allocation1 [shape = 'u32[144,128]{1,0:T(1,128)}', space=vmem, size = 0x12000, scoped, tag = 'internal scratch']
  #allocation2 [shape = 'f32[4,8,1]{2,1,0:T(8,128)}', space=vmem, size = 0x4000, scoped, tag = 'scratch operand']
  #allocation3 [shape = 'f32[4,8,1]{2,1,0:T(8,128)}', space=vmem, size = 0x4000, scoped, tag = 'scratch operand']
  #allocation4 [shape = 'f32[4,8,8]{2,1,0:T(8,128)}', space=vmem, size = 0x4000, scoped, tag = 'scratch operand']
  %s0 = inlined_call_operand.hbm [shape: f32[2,8,32], index: 0, kind: input, shape index: {}]
  %s1 = inlined_call_operand.hbm [shape: f32[2,16,32], index: 1, kind: input, shape index: {}]
  %s2 = inlined_call_operand.hbm [shape: f32[2,16,32], index: 2, kind: input, shape index: {}]
  %s3 = inlined_call_operand.vmem [shape: f32[2,4,8,8], index: 3, kind: output, shape index: {}]
  %s4 = sld [smem:[#allocation0]]
  $region65: #{_lambda_.1} parent=0
    _
  %s6 = ssub.s32 1, %s4
  %s7 = scalar_select 0, %s6, %s4
  $region1: #{_lambda_.1} parent=0
    #allocation5 [shape = 'u8[8192]{0}', space=vmem, size = 0x2000, scoped, tag = 'input window, operand 0']
    #allocation6 [shape = 's32[2]{0}', space=sflag, size = 0x8, scoped, tag = 'scoped memory for _lambda_.1']
    #allocation7 [shape = 'u8[16384]{0}', space=vmem, size = 0x4000, scoped, tag = 'input window, operand 1']
    #allocation8 [shape = 's32[2]{0}', space=sflag, size = 0x8, scoped, tag = 'scoped memory for _lambda_.1']
    #allocation9 [shape = 'u8[16384]{0}', space=vmem, size = 0x4000, scoped, tag = 'input window, operand 2']
    %8 = vsyncpa [#allocation6], 0
    %s9 = scalar_lea.sflag [#allocation6], 1
    %10 = vsyncpa %s9, 0
    %11 = vsyncpa [#allocation8], 0
    %s12 = scalar_lea.sflag [#allocation8], 1
    %13 = vsyncpa %s12, 0
    loop: start=0, step=1, limit=4
    $region2: #{_lambda_.1} parent=1 // loop_pre_header
      _
    $region3: #{_lambda_.1} parent=1 // loop_header
      %s15 = sphi 0, %s19
      %p16 = scmp.ge.s32.totalorder %s15, 4
      %s22 = sphi 0, %s41
      %s23 = sphi 0, %s37
      %s24 = sphi 0, %s33
      %s25 = sphi 0, %s22
      %s26 = sphi 0, %s23
      %s27 = sphi 0, %s24
      %s28 = sphi 0, %s25
      %s29 = sphi 0, %s26
      %s30 = sphi 0, %s27
      %s46 = sphi 0, %s48
      %s49 = sphi 0, %s46
      %s50 = sphi 0, %s49
      %s66 = sphi 0, %s50
      %s74 = sphi 0, %s76
      %s77 = sphi 0, %s74
      %s78 = sphi 0, %s77
      %s94 = sphi 0, %s78
      %s102 = sphi 0, %s104
      %s105 = sphi 0, %s102
      %s106 = sphi 0, %s105
      %s122 = sphi 0, %s106
      %s130 = sphi 0, %s132
      %s133 = sphi 0, %s130
      %s134 = sphi 0, %s133
      %s150 = sphi 0, %s134
    $region4: #{_lambda_.1} parent=1 // loop_header_branch
      %18 = sbr.rel (%p16) target = $region8
    $region5: #{_lambda_.1} parent=1 // loop_body
      %s20 = ssub.s32 %s15, 1
      %s21 = ssub.s32 %s15, 2
      %s31 = sadd.s32 1, %s24
      %p32 = scmp.ge.s32.totalorder %s31, 1
      %s33 = scalar_select %p32, 0, %s31
      %s34 = sadd.s32 1, %s23
      %s35 = scalar_select %p32, %s34, %s23
      %p36 = scmp.ge.s32.totalorder %s35, 1
      %s37 = scalar_select %p36, 0, %s35
      %s38 = sadd.s32 1, %s22
      %s39 = scalar_select %p36, %s38, %s22
      %p40 = scmp.ge.s32.totalorder %s39, 2
      %s41 = scalar_select %p40, 0, %s39
      %s42 = ssub.s32 %s22, %s41
      %s43 = ssub.s32 %s23, %s37
      %s44 = sor.u32 %s42, %s43
      %p45 = scmp.eq.s32.totalorder %s44, 0
      %s47 = sadd.s32 %s46, 1
      %s48 = scalar_select %p45, %s46, %s47
      %p51 = pneg %p45
      %p52 = scmp.eq.s32.totalorder %s15, 1
      %p53 = por %p51, %p52
      %p54 = scmp.ne.s32.totalorder %s46, %s49
      %p55 = scmp.eq.s32.totalorder %s15, 0
      %p56 = por %p54, %p55
      %p57 = scmp.ne.s32.totalorder %s46, %s49
      %p58 = scmp.eq.s32.totalorder %s20, 1
      %p59 = por %p57, %p58
      %p60 = scmp.ne.s32.totalorder %s49, %s50
      %p61 = scmp.eq.s32.totalorder %s20, 0
      %p62 = por %p60, %p61
      %p63 = scmp.ne.s32.totalorder %s49, %s50
      %p64 = scmp.eq.s32.totalorder %s21, 1
      %p65 = por %p63, %p64
      %p67 = scmp.ne.s32.totalorder %s50, %s66
      %p68 = scmp.eq.s32.totalorder %s21, 0
      %p69 = por %p67, %p68
      %s70 = ssub.s32 %s22, %s41
      %s71 = ssub.s32 %s24, %s33
      %s72 = sor.u32 %s70, %s71
      %p73 = scmp.eq.s32.totalorder %s72, 0
      %s75 = sadd.s32 %s74, 1
      %s76 = scalar_select %p73, %s74, %s75
      %p79 = pneg %p73
      %p80 = scmp.eq.s32.totalorder %s15, 1
      %p81 = por %p79, %p80
      %p82 = scmp.ne.s32.totalorder %s74, %s77
      %p83 = scmp.eq.s32.totalorder %s15, 0
      %p84 = por %p82, %p83
      %p85 = scmp.ne.s32.totalorder %s74, %s77
      %p86 = scmp.eq.s32.totalorder %s20, 1
      %p87 = por %p85, %p86
      %p88 = scmp.ne.s32.totalorder %s77, %s78
      %p89 = scmp.eq.s32.totalorder %s20, 0
      %p90 = por %p88, %p89
      %p91 = scmp.ne.s32.totalorder %s77, %s78
      %p92 = scmp.eq.s32.totalorder %s21, 1
      %p93 = por %p91, %p92
      %p95 = scmp.ne.s32.totalorder %s78, %s94
      %p96 = scmp.eq.s32.totalorder %s21, 0
      %p97 = por %p95, %p96
      %s98 = ssub.s32 %s22, %s41
      %s99 = ssub.s32 %s24, %s33
      %s100 = sor.u32 %s98, %s99
      %p101 = scmp.eq.s32.totalorder %s100, 0
      %s103 = sadd.s32 %s102, 1
      %s104 = scalar_select %p101, %s102, %s103
      %p107 = pneg %p101
      %p108 = scmp.eq.s32.totalorder %s15, 1
      %p109 = por %p107, %p108
      %p110 = scmp.ne.s32.totalorder %s102, %s105
      %p111 = scmp.eq.s32.totalorder %s15, 0
      %p112 = por %p110, %p111
      %p113 = scmp.ne.s32.totalorder %s102, %s105
      %p114 = scmp.eq.s32.totalorder %s20, 1
      %p115 = por %p113, %p114
      %p116 = scmp.ne.s32.totalorder %s105, %s106
      %p117 = scmp.eq.s32.totalorder %s20, 0
      %p118 = por %p116, %p117
      %p119 = scmp.ne.s32.totalorder %s105, %s106
      %p120 = scmp.eq.s32.totalorder %s21, 1
      %p121 = por %p119, %p120
      %p123 = scmp.ne.s32.totalorder %s106, %s122
      %p124 = scmp.eq.s32.totalorder %s21, 0
      %p125 = por %p123, %p124
      %s126 = ssub.s32 %s22, %s41
      %s127 = ssub.s32 %s23, %s37
      %s128 = sor.u32 %s126, %s127
      %p129 = scmp.eq.s32.totalorder %s128, 0
      %s131 = sadd.s32 %s130, 1
      %s132 = scalar_select %p129, %s130, %s131
      %p135 = pneg %p129
      %p136 = scmp.eq.s32.totalorder %s15, 1
      %p137 = por %p135, %p136
      %p138 = scmp.ne.s32.totalorder %s130, %s133
      %p139 = scmp.eq.s32.totalorder %s15, 0
      %p140 = por %p138, %p139
      %p141 = scmp.ne.s32.totalorder %s130, %s133
      %p142 = scmp.eq.s32.totalorder %s20, 1
      %p143 = por %p141, %p142
      %p144 = scmp.ne.s32.totalorder %s133, %s134
      %p145 = scmp.eq.s32.totalorder %s20, 0
      %p146 = por %p144, %p145
      %p147 = scmp.ne.s32.totalorder %s133, %s134
      %p148 = scmp.eq.s32.totalorder %s21, 1
      %p149 = por %p147, %p148
      %p151 = scmp.ne.s32.totalorder %s134, %s150
      %p152 = scmp.eq.s32.totalorder %s21, 0
      %p153 = por %p151, %p152
      %p154 = scmp.le.s32.totalorder 1, %s15
      %p155 = scmp.lt.s32.totalorder %s15, 3
      %p156 = pnand %p154, %p155
      %p157 = pneg %p156
      // Predicated region
      $region9: #{_lambda_.1} parent=5 // pred_check
        _
      $region10: #{_lambda_.1} parent=5 // pred_check_branch
        %159 = sbr.rel (%p156) target = $region12
      $region11: #{_lambda_.1} parent=5 // pred_region
        %s160 = ssub.s32 %s15, 1
      $region12: #{_lambda_.1} parent=5 // pred_fallthru
        _
      %p161 = scmp.lt.s32.totalorder %s15, 2
      // Predicated region
      $region13: #{_lambda_.1} parent=5 // pred_check
        %p162 = pneg %p161
      $region14: #{_lambda_.1} parent=5 // pred_check_branch
        %164 = sbr.rel (%p162) target = $region16
      $region15: #{_lambda_.1} parent=5 // pred_region
        // Predicated region
        $region17: #{_lambda_.1} parent=15 // pred_check
          %p165 = pneg %p56
        $region18: #{_lambda_.1} parent=15 // pred_check_branch
          %167 = sbr.rel (%p165) target = $region20
        $region19: #{_lambda_.1} parent=15 // pred_region
          %s168 = sand.u32 %s46, 1
          %s169 = scalar_lea.sflag [#allocation6], %s168
          %s170 = sand.u32 %s46, 1
          %s171 = smul.addr %s170, 8
          %s172 = scalar_lea.vmem [#allocation5], %s171
          %s174 = ssub.s32 128, 128
          %175 = vsyncadd %s169, %s174
          %s176 = sadd.s32 %s23, %s22
          %s177 = smul.addr %s176, 128
          %s178 = scalar_lea.hbm %s0, %s177
          %s180 = sshll.u32 %s172, 4
          %s181 = int_to_ptr.vmem [resolvable:$true] %s180
          %183 = dma.hbm_to_vmem [thread:$0]  %s178, 128, %s181, %s169
        $region20: #{_lambda_.1} parent=15 // pred_fallthru
          _
        // Predicated region
        $region21: #{_lambda_.1} parent=15 // pred_check
          %p184 = pneg %p84
        $region22: #{_lambda_.1} parent=15 // pred_check_branch
          %186 = sbr.rel (%p184) target = $region24
        $region23: #{_lambda_.1} parent=15 // pred_region
          %s187 = sand.u32 %s15, 1
          %s188 = scalar_lea.sflag [#allocation8], %s187
          %s189 = sand.u32 %s74, 1
          %s190 = smul.addr %s189, 16
          %s191 = scalar_lea.vmem [#allocation7], %s190
          %s192 = smul.u32 2, %s24
          %s194 = ssub.s32 256, 256
          %195 = vsyncadd %s188, %s194
          %s196 = smul.addr %s22, 2
          %s197 = sadd.s32 %s192, %s196
          %s198 = smul.addr %s197, 128
          %s199 = scalar_lea.hbm %s1, %s198
          %s200 = sshll.u32 %s191, 4
          %s201 = int_to_ptr.vmem [resolvable:$true] %s200
          %206 = dma.hbm_to_vmem [thread:$0]  %s199, 256, %s201, %s188, 128, 128, 8
        $region24: #{_lambda_.1} parent=15 // pred_fallthru
          _
        // Predicated region
        $region25: #{_lambda_.1} parent=15 // pred_check
          %p207 = pneg %p112
        $region26: #{_lambda_.1} parent=15 // pred_check_branch
          %209 = sbr.rel (%p207) target = $region28
        $region27: #{_lambda_.1} parent=15 // pred_region
          %s210 = sand.u32 %s15, 1
          %s211 = scalar_lea.sflag [#allocation8], %s210
          %s212 = sand.u32 %s102, 1
          %s213 = smul.addr %s212, 16
          %s214 = scalar_lea.vmem [#allocation9], %s213
          %s215 = smul.u32 2, %s24
          %s217 = ssub.s32 256, 256
          %218 = vsyncadd %s211, %s217
          %s219 = smul.addr %s22, 2
          %s220 = sadd.s32 %s215, %s219
          %s221 = smul.addr %s220, 128
          %s222 = scalar_lea.hbm %s2, %s221
          %s223 = sshll.u32 %s214, 4
          %s224 = int_to_ptr.vmem [resolvable:$true] %s223
          %229 = dma.hbm_to_vmem [thread:$0]  %s222, 256, %s224, %s211, 128, 128, 8
        $region28: #{_lambda_.1} parent=15 // pred_fallthru
          _
      $region16: #{_lambda_.1} parent=5 // pred_fallthru
        _
      %p230 = scmp.le.s32.totalorder 1, %s15
      %p231 = scmp.lt.s32.totalorder %s15, 3
      %p232 = pnand %p230, %p231
      %p233 = pneg %p232
      // Predicated region
      $region29: #{_lambda_.1} parent=5 // pred_check
        _
      $region30: #{_lambda_.1} parent=5 // pred_check_branch
        %235 = sbr.rel (%p232) target = $region32
      $region31: #{_lambda_.1} parent=5 // pred_region
        %s236 = ssub.s32 %s15, 1
        %s237 = sand.u32 %s49, 1
        %s238 = scalar_lea.sflag [#allocation6], %s237
        %s239 = sand.u32 %s49, 1
        %s240 = smul.addr %s239, 8
        %s241 = scalar_lea.vmem [#allocation5], %s240
        // Predicated region
        $region33: #{_lambda_.1} parent=31 // pred_check
          %p242 = pneg %p62
        $region34: #{_lambda_.1} parent=31 // pred_check_branch
          %244 = sbr.rel (%p242) target = $region36
        $region35: #{_lambda_.1} parent=31 // pred_region
          %245 = dma.done %s238, 128
        $region36: #{_lambda_.1} parent=31 // pred_fallthru
          _
        %s246 = sand.u32 %s20, 1
        %s247 = scalar_lea.sflag [#allocation8], %s246
        %s248 = sand.u32 %s77, 1
        %s249 = smul.addr %s248, 16
        %s250 = scalar_lea.vmem [#allocation7], %s249
        // Predicated region
        $region37: #{_lambda_.1} parent=31 // pred_check
          %p251 = pneg %p90
        $region38: #{_lambda_.1} parent=31 // pred_check_branch
          %253 = sbr.rel (%p251) target = $region40
        $region39: #{_lambda_.1} parent=31 // pred_region
          %254 = dma.done %s247, 256
        $region40: #{_lambda_.1} parent=31 // pred_fallthru
          _
        %s255 = sand.u32 %s20, 1
        %s256 = scalar_lea.sflag [#allocation8], %s255
        %s257 = sand.u32 %s105, 1
        %s258 = smul.addr %s257, 16
        %s259 = scalar_lea.vmem [#allocation9], %s258
        // Predicated region
        $region41: #{_lambda_.1} parent=31 // pred_check
          %p260 = pneg %p118
        $region42: #{_lambda_.1} parent=31 // pred_check_branch
          %262 = sbr.rel (%p260) target = $region44
        $region43: #{_lambda_.1} parent=31 // pred_region
          %263 = dma.done %s256, 256
        $region44: #{_lambda_.1} parent=31 // pred_fallthru
          _
        %s264 = sand.u32 %s49, 1
        %s265 = scalar_lea.sflag [#allocation6], %s264
        %s266 = sand.u32 %s49, 1
        %s267 = smul.addr %s266, 8
        %s268 = scalar_lea.vmem [#allocation5], %s267
        %p269 = pneg %p62
        %p270 = pneg %p59
        %s271 = sand.u32 %s20, 1
        %s272 = scalar_lea.sflag [#allocation8], %s271
        %s273 = sand.u32 %s77, 1
        %s274 = smul.addr %s273, 16
        %s275 = scalar_lea.vmem [#allocation7], %s274
        %p276 = pneg %p90
        %p277 = pneg %p87
        %s278 = sand.u32 %s20, 1
        %s279 = scalar_lea.sflag [#allocation8], %s278
        %s280 = sand.u32 %s105, 1
        %s281 = smul.addr %s280, 16
        %s282 = scalar_lea.vmem [#allocation9], %s281
        %p283 = pneg %p118
        %p284 = pneg %p115
        %p285 = pneg %p146
        %p286 = pneg %p143
        %p287 = scmp.lt.s32.totalorder %s25, 1
        %s288 = scalar_select %p287, %s25, 1
        %p289 = scmp.lt.s32.totalorder %s26, 0
        %s290 = scalar_select %p289, %s26, 0
        %s291 = smul.addr %s288, 4
        %s292 = sadd.s32 %s290, %s291
        %s293 = smul.addr %s292, 8
        %s294 = scalar_lea.vmem %s3, %s293
        %s295 = smul.u32 2, %s27
        %s296 = smul.u32 2, %s27
        %p297 = scmp.lt.s32.totalorder %s25, 1
        %s298 = scalar_select %p297, %s25, 1
        %p299 = scmp.lt.s32.totalorder %s26, 0
        %s300 = scalar_select %p299, %s26, 0
        %s301 = smul.addr %s298, 4
        %s302 = sadd.s32 %s300, %s301
        %s303 = smul.addr %s302, 8
        %s304 = scalar_lea.vmem %s3, %s303
        %p305 = scmp.eq.s32.totalorder %s27, 0
        // Predicated region
        $region45: #{_lambda_.1} parent=31 // pred_check
          %p306 = pneg %p305
        $region46: #{_lambda_.1} parent=31 // pred_check_branch
          %308 = sbr.rel (%p306) target = $region48
        $region47: #{_lambda_.1} parent=31 // pred_region
          %vm309 = vcmask 7168
          %310 = vst.msk [vmem:[#allocation2] sm:$0xff] %vm309, -inf
          %311 = vst.msk [vmem:[#allocation2 + $0x8] sm:$0xff] %vm309, -inf
          %312 = vst.msk [vmem:[#allocation2 + $0x10] sm:$0xff] %vm309, -inf
          %313 = vst.msk [vmem:[#allocation2 + $0x18] sm:$0xff] %vm309, -inf
          %314 = vst.msk [vmem:[#allocation3] sm:$0xff] %vm309, 0.0
          %315 = vst.msk [vmem:[#allocation3 + $0x8] sm:$0xff] %vm309, 0.0
          %316 = vst.msk [vmem:[#allocation3 + $0x10] sm:$0xff] %vm309, 0.0
          %317 = vst.msk [vmem:[#allocation3 + $0x18] sm:$0xff] %vm309, 0.0
          %vm318 = vcmask 64512
          %319 = vst.msk [vmem:[#allocation4] sm:$0xff] %vm318, 0.0
          %320 = vst.msk [vmem:[#allocation4 + $0x8] sm:$0xff] %vm318, 0.0
          %321 = vst.msk [vmem:[#allocation4 + $0x10] sm:$0xff] %vm318, 0.0
          %322 = vst.msk [vmem:[#allocation4 + $0x18] sm:$0xff] %vm318, 0.0
        $region48: #{_lambda_.1} parent=31 // pred_fallthru
          _
        %v323 = vld [vmem:[%s241] sm:$0xff]
        %v324 = vld [vmem:[%s250] sm:$0xff]
        %v325 = vld [vmem:[%s250 + $0x8] sm:$0xff]
        %v326 = vld [vmem:[%s259] sm:$0xff]
        %v327 = vld [vmem:[%s259 + $0x8] sm:$0xff]
        %vm328 = vcmask 64512
        %v330 = vsel %vm328, %v323, 0
        %v333 = vsel %vm328, %v324, 0
        %v336 = vsel %vm328, %v325, 0
        %338 = vmatprep.subr.mxu0 0.0
        %339 = vmatpush1.xpose.msra.mxu0 0.0
        %340 = vmatprep.subr.mxu0 0.0
        %341 = vmatpush1.xpose.msra.mxu0 0.0
        %342 = vmatprep.subr.mxu0 0.0
        %343 = vmatpush1.xpose.msra.mxu0 0.0
        %344 = vmatprep.subr.mxu0 0.0
        %345 = vmatpush1.xpose.msra.mxu0 0.0
        %346 = vmatprep.subr.mxu0 0.0
        %347 = vmatpush1.xpose.msra.mxu0 0.0
        %348 = vmatprep.subr.mxu0 0.0
        %349 = vmatpush1.xpose.msra.mxu0 0.0
        %350 = vmatprep.subr.mxu0 0.0
        %351 = vmatpush1.xpose.msra.mxu0 0.0
        %352 = vmatprep.subr.mxu0 0.0
        %353 = vmatpush1.xpose.msra.mxu0 0.0
        %354 = vmatprep.subr.mxu0 0.0
        %355 = vmatpush1.xpose.msra.mxu0 0.0
        %356 = vmatprep.subr.mxu0 0.0
        %357 = vmatpush1.xpose.msra.mxu0 0.0
        %358 = vmatprep.subr.mxu0 0.0
        %359 = vmatpush1.xpose.msra.mxu0 0.0
        %360 = vmatprep.subr.mxu0 0.0
        %361 = vmatpush1.xpose.msra.mxu0 0.0
        %362 = vmatprep.subr.mxu0 0.0
        %363 = vmatpush1.xpose.msra.mxu0 0.0
        %364 = vmatprep.subr.mxu0 0.0
        %365 = vmatpush1.xpose.msra.mxu0 0.0
        %366 = vmatprep.subr.mxu0 0.0
        %367 = vmatpush1.xpose.msra.mxu0 %v336
        %368 = vmatprep.subr.mxu0 0.0
        %369 = vmatpush1.xpose.msra.mxu0 %v333
        %370 = vmatprep.subr.mxu0 0.0
        %371 = vmatpush2.xpose.msra.mxu0 0.0
        %372 = vmatprep.subr.mxu0 0.0
        %373 = vmatpush2.xpose.msra.mxu0 0.0
        %374 = vmatprep.subr.mxu0 0.0
        %375 = vmatpush2.xpose.msra.mxu0 0.0
        %376 = vmatprep.subr.mxu0 0.0
        %377 = vmatpush2.xpose.msra.mxu0 0.0
        %378 = vmatprep.subr.mxu0 0.0
        %379 = vmatpush2.xpose.msra.mxu0 0.0
        %380 = vmatprep.subr.mxu0 0.0
        %381 = vmatpush2.xpose.msra.mxu0 0.0
        %382 = vmatprep.subr.mxu0 0.0
        %383 = vmatpush2.xpose.msra.mxu0 0.0
        %384 = vmatprep.subr.mxu0 0.0
        %385 = vmatpush2.xpose.msra.mxu0 0.0
        %386 = vmatprep.subr.mxu0 0.0
        %387 = vmatpush2.xpose.msra.mxu0 0.0
        %388 = vmatprep.subr.mxu0 0.0
        %389 = vmatpush2.xpose.msra.mxu0 0.0
        %390 = vmatprep.subr.mxu0 0.0
        %391 = vmatpush2.xpose.msra.mxu0 0.0
        %392 = vmatprep.subr.mxu0 0.0
        %393 = vmatpush2.xpose.msra.mxu0 0.0
        %394 = vmatprep.subr.mxu0 0.0
        %395 = vmatpush2.xpose.msra.mxu0 0.0
        %396 = vmatprep.subr.mxu0 0.0
        %397 = vmatpush2.xpose.msra.mxu0 0.0
        %398 = vmatprep.subr.mxu0 0.0
        %399 = vmatpush2.xpose.msra.mxu0 0.0
        %400 = vmatprep.subr.mxu0 0.0
        %401 = vmatpush2.xpose.msra.mxu0 0.0
        %402 = vmatprep.mubr.f32.mxu0 0.0
        %403 = vmatmul.mubr.f32.gmra.mxu0 %v330
        %v404 = vpop.f32.mrf.mxu0
        %v405 = vadd.f32 0.0, %v404
        %v406 = vpop.f32.mrf.mxu0
        %407 = vdwg.mxu0
        %v408 = vmul.f32 %v405, 0.35355338
        %v409 = vld [vmem:[#allocation2] sm:$0xff]
        %vm410 = vcmask 130048
        %v411 = vsel %vm410, %v408, -inf
        %412 = vmax.xlane.f32.xlu0 %v411
        %v413 = vpop.xlane.xlu0 %412
        %v414 = vmax.f32 %v409, %v413
        %v415 = vsub.f32 %v409, %v414
        %v416 = vmul.f32 %v415, 1.442695
        %v417 = vpow.pop %v416
        %419 = vset.pattern.permute.xlu0 0
        %420 = vperm.xlu0 %419, %v414
        %v421 = vpop.permute.xlu0 %420
        %v423 = vsub.f32 %v408, %v421
        %v424 = vmul.f32 %v423, 1.442695
        %v425 = vpow.pop %v424
        %v426 = vld [vmem:[#allocation3] sm:$0xff]
        %v427 = vmul.f32 %v417, %v426
        %v428 = vsel %vm410, %v425, 0.0
        %429 = vadd.xlane.f32.xlu0 %v428
        %v430 = vpop.xlane.xlu0 %429
        %v431 = vadd.f32 %v427, %v430
        %vm432 = vcmask 7168
        %433 = vst.msk [vmem:[#allocation3] sm:$0xff] %vm432, %v431
        %434 = vst.msk [vmem:[#allocation2] sm:$0xff] %vm432, %v414
        %v435 = vld [vmem:[#allocation4] sm:$0xff]
        %437 = vset.pattern.permute.xlu0 0
        %438 = vperm.xlu0 %437, %v417
        %v439 = vpop.permute.xlu0 %438
        %v441 = vmul.f32 %v439, %v435
        %v443 = vsel %vm410, %v425, 0
        %445 = vmatprep.subr.mxu0 0.0
        %446 = vmatpush1.msra.mxu0 0.0
        %447 = vmatprep.subr.mxu0 0.0
        %448 = vmatpush1.msra.mxu0 0.0
        %449 = vmatprep.subr.mxu0 0.0
        %450 = vmatpush1.msra.mxu0 0.0
        %451 = vmatprep.subr.mxu0 0.0
        %452 = vmatpush1.msra.mxu0 0.0
        %453 = vmatprep.subr.mxu0 0.0
        %454 = vmatpush1.msra.mxu0 0.0
        %455 = vmatprep.subr.mxu0 0.0
        %456 = vmatpush1.msra.mxu0 0.0
        %457 = vmatprep.subr.mxu0 0.0
        %458 = vmatpush1.msra.mxu0 0.0
        %459 = vmatprep.subr.mxu0 0.0
        %460 = vmatpush1.msra.mxu0 0.0
        %461 = vmatprep.subr.mxu0 0.0
        %462 = vmatpush1.msra.mxu0 0.0
        %463 = vmatprep.subr.mxu0 0.0
        %464 = vmatpush1.msra.mxu0 0.0
        %465 = vmatprep.subr.mxu0 0.0
        %466 = vmatpush1.msra.mxu0 0.0
        %467 = vmatprep.subr.mxu0 0.0
        %468 = vmatpush1.msra.mxu0 0.0
        %469 = vmatprep.subr.mxu0 0.0
        %470 = vmatpush1.msra.mxu0 0.0
        %471 = vmatprep.subr.mxu0 0.0
        %472 = vmatpush1.msra.mxu0 0.0
        %473 = vmatprep.subr.mxu0 0.0
        %474 = vmatpush1.msra.mxu0 %v327
        %475 = vmatprep.subr.mxu0 0.0
        %476 = vmatpush1.msra.mxu0 %v326
        %477 = vmatprep.subr.mxu0 0.0
        %478 = vmatpush2.msra.mxu0 0.0
        %479 = vmatprep.subr.mxu0 0.0
        %480 = vmatpush2.msra.mxu0 0.0
        %481 = vmatprep.subr.mxu0 0.0
        %482 = vmatpush2.msra.mxu0 0.0
        %483 = vmatprep.subr.mxu0 0.0
        %484 = vmatpush2.msra.mxu0 0.0
        %485 = vmatprep.subr.mxu0 0.0
        %486 = vmatpush2.msra.mxu0 0.0
        %487 = vmatprep.subr.mxu0 0.0
        %488 = vmatpush2.msra.mxu0 0.0
        %489 = vmatprep.subr.mxu0 0.0
        %490 = vmatpush2.msra.mxu0 0.0
        %491 = vmatprep.subr.mxu0 0.0
        %492 = vmatpush2.msra.mxu0 0.0
        %493 = vmatprep.subr.mxu0 0.0
        %494 = vmatpush2.msra.mxu0 0.0
        %495 = vmatprep.subr.mxu0 0.0
        %496 = vmatpush2.msra.mxu0 0.0
        %497 = vmatprep.subr.mxu0 0.0
        %498 = vmatpush2.msra.mxu0 0.0
        %499 = vmatprep.subr.mxu0 0.0
        %500 = vmatpush2.msra.mxu0 0.0
        %501 = vmatprep.subr.mxu0 0.0
        %502 = vmatpush2.msra.mxu0 0.0
        %503 = vmatprep.subr.mxu0 0.0
        %504 = vmatpush2.msra.mxu0 0.0
        %505 = vmatprep.subr.mxu0 0.0
        %506 = vmatpush2.msra.mxu0 0.0
        %507 = vmatprep.subr.mxu0 0.0
        %508 = vmatpush2.msra.mxu0 0.0
        %509 = vmatprep.mubr.f32.mxu0 0.0
        %510 = vmatmul.mubr.f32.gmra.mxu0 %v443
        %v511 = vpop.f32.mrf.mxu0
        %v512 = vadd.f32 0.0, %v511
        %v513 = vpop.f32.mrf.mxu0
        %514 = vdwg.mxu0
        %v515 = vadd.f32 %v441, %v512
        %516 = vst.msk [vmem:[#allocation4] sm:$0xff] %vm328, %v515
        %517 = vrot.lane.b32.xlu0 %v323, 120
        %v518 = vpop.permute.xlu0 %517
        %519 = vrot.lane.b32.xlu0 %v324, 120
        %v520 = vpop.permute.xlu0 %519
        %521 = vrot.lane.b32.xlu0 %v325, 120
        %v522 = vpop.permute.xlu0 %521
        %v523 = vsel %vm328, %v518, 0
        %v525 = vsel %vm328, %v520, 0
        %v527 = vsel %vm328, %v522, 0
        %529 = vmatprep.subr.mxu0 0.0
        %530 = vmatpush1.xpose.msra.mxu0 0.0
        %531 = vmatprep.subr.mxu0 0.0
        %532 = vmatpush1.xpose.msra.mxu0 0.0
        %533 = vmatprep.subr.mxu0 0.0
        %534 = vmatpush1.xpose.msra.mxu0 0.0
        %535 = vmatprep.subr.mxu0 0.0
        %536 = vmatpush1.xpose.msra.mxu0 0.0
        %537 = vmatprep.subr.mxu0 0.0
        %538 = vmatpush1.xpose.msra.mxu0 0.0
        %539 = vmatprep.subr.mxu0 0.0
        %540 = vmatpush1.xpose.msra.mxu0 0.0
        %541 = vmatprep.subr.mxu0 0.0
        %542 = vmatpush1.xpose.msra.mxu0 0.0
        %543 = vmatprep.subr.mxu0 0.0
        %544 = vmatpush1.xpose.msra.mxu0 0.0
        %545 = vmatprep.subr.mxu0 0.0
        %546 = vmatpush1.xpose.msra.mxu0 0.0
        %547 = vmatprep.subr.mxu0 0.0
        %548 = vmatpush1.xpose.msra.mxu0 0.0
        %549 = vmatprep.subr.mxu0 0.0
        %550 = vmatpush1.xpose.msra.mxu0 0.0
        %551 = vmatprep.subr.mxu0 0.0
        %552 = vmatpush1.xpose.msra.mxu0 0.0
        %553 = vmatprep.subr.mxu0 0.0
        %554 = vmatpush1.xpose.msra.mxu0 0.0
        %555 = vmatprep.subr.mxu0 0.0
        %556 = vmatpush1.xpose.msra.mxu0 0.0
        %557 = vmatprep.subr.mxu0 0.0
        %558 = vmatpush1.xpose.msra.mxu0 %v527
        %559 = vmatprep.subr.mxu0 0.0
        %560 = vmatpush1.xpose.msra.mxu0 %v525
        %561 = vmatprep.subr.mxu0 0.0
        %562 = vmatpush2.xpose.msra.mxu0 0.0
        %563 = vmatprep.subr.mxu0 0.0
        %564 = vmatpush2.xpose.msra.mxu0 0.0
        %565 = vmatprep.subr.mxu0 0.0
        %566 = vmatpush2.xpose.msra.mxu0 0.0
        %567 = vmatprep.subr.mxu0 0.0
        %568 = vmatpush2.xpose.msra.mxu0 0.0
        %569 = vmatprep.subr.mxu0 0.0
        %570 = vmatpush2.xpose.msra.mxu0 0.0
        %571 = vmatprep.subr.mxu0 0.0
        %572 = vmatpush2.xpose.msra.mxu0 0.0
        %573 = vmatprep.subr.mxu0 0.0
        %574 = vmatpush2.xpose.msra.mxu0 0.0
        %575 = vmatprep.subr.mxu0 0.0
        %576 = vmatpush2.xpose.msra.mxu0 0.0
        %577 = vmatprep.subr.mxu0 0.0
        %578 = vmatpush2.xpose.msra.mxu0 0.0
        %579 = vmatprep.subr.mxu0 0.0
        %580 = vmatpush2.xpose.msra.mxu0 0.0
        %581 = vmatprep.subr.mxu0 0.0
        %582 = vmatpush2.xpose.msra.mxu0 0.0
        %583 = vmatprep.subr.mxu0 0.0
        %584 = vmatpush2.xpose.msra.mxu0 0.0
        %585 = vmatprep.subr.mxu0 0.0
        %586 = vmatpush2.xpose.msra.mxu0 0.0
        %587 = vmatprep.subr.mxu0 0.0
        %588 = vmatpush2.xpose.msra.mxu0 0.0
        %589 = vmatprep.subr.mxu0 0.0
        %590 = vmatpush2.xpose.msra.mxu0 0.0
        %591 = vmatprep.subr.mxu0 0.0
        %592 = vmatpush2.xpose.msra.mxu0 0.0
        %593 = vmatprep.mubr.f32.mxu0 0.0
        %594 = vmatmul.mubr.f32.gmra.mxu0 %v523
        %v595 = vpop.f32.mrf.mxu0
        %v596 = vadd.f32 0.0, %v595
        %v597 = vpop.f32.mrf.mxu0
        %598 = vdwg.mxu0
        %v599 = vmul.f32 %v596, 0.35355338
        %s600 = scalar_lea.vmem [#allocation2], 8
        %v601 = vld [vmem:[%s600] sm:$0xff]
        %v602 = vsel %vm410, %v599, -inf
        %603 = vmax.xlane.f32.xlu0 %v602
        %v604 = vpop.xlane.xlu0 %603
        %v605 = vmax.f32 %v601, %v604
        %v606 = vsub.f32 %v601, %v605
        %v607 = vmul.f32 %v606, 1.442695
        %v608 = vpow.pop %v607
        %610 = vset.pattern.permute.xlu0 0
        %611 = vperm.xlu0 %610, %v605
        %v612 = vpop.permute.xlu0 %611
        %v614 = vsub.f32 %v599, %v612
        %v615 = vmul.f32 %v614, 1.442695
        %v616 = vpow.pop %v615
        %s617 = scalar_lea.vmem [#allocation3], 8
        %v618 = vld [vmem:[%s617] sm:$0xff]
        %v619 = vmul.f32 %v608, %v618
        %v620 = vsel %vm410, %v616, 0.0
        %621 = vadd.xlane.f32.xlu0 %v620
        %v622 = vpop.xlane.xlu0 %621
        %v623 = vadd.f32 %v619, %v622
        %624 = vst.msk [vmem:[%s617] sm:$0xff] %vm432, %v623
        %625 = vst.msk [vmem:[%s600] sm:$0xff] %vm432, %v605
        %s626 = scalar_lea.vmem [#allocation4], 8
        %v627 = vld [vmem:[%s626] sm:$0xff]
        %629 = vset.pattern.permute.xlu0 0
        %630 = vperm.xlu0 %629, %v608
        %v631 = vpop.permute.xlu0 %630
        %v633 = vmul.f32 %v631, %v627
        %636 = vrot.lane.b32.xlu0 %v326, 120
        %v637 = vpop.permute.xlu0 %636
        %638 = vrot.lane.b32.xlu0 %v327, 120
        %v639 = vpop.permute.xlu0 %638
        %v643 = vsel %vm410, %v616, 0
        %645 = vmatprep.subr.mxu0 0.0
        %646 = vmatpush1.msra.mxu0 0.0
        %647 = vmatprep.subr.mxu0 0.0
        %648 = vmatpush1.msra.mxu0 0.0
        %649 = vmatprep.subr.mxu0 0.0
        %650 = vmatpush1.msra.mxu0 0.0
        %651 = vmatprep.subr.mxu0 0.0
        %652 = vmatpush1.msra.mxu0 0.0
        %653 = vmatprep.subr.mxu0 0.0
        %654 = vmatpush1.msra.mxu0 0.0
        %655 = vmatprep.subr.mxu0 0.0
        %656 = vmatpush1.msra.mxu0 0.0
        %657 = vmatprep.subr.mxu0 0.0
        %658 = vmatpush1.msra.mxu0 0.0
        %659 = vmatprep.subr.mxu0 0.0
        %660 = vmatpush1.msra.mxu0 0.0
        %661 = vmatprep.subr.mxu0 0.0
        %662 = vmatpush1.msra.mxu0 0.0
        %663 = vmatprep.subr.mxu0 0.0
        %664 = vmatpush1.msra.mxu0 0.0
        %665 = vmatprep.subr.mxu0 0.0
        %666 = vmatpush1.msra.mxu0 0.0
        %667 = vmatprep.subr.mxu0 0.0
        %668 = vmatpush1.msra.mxu0 0.0
        %669 = vmatprep.subr.mxu0 0.0
        %670 = vmatpush1.msra.mxu0 0.0
        %671 = vmatprep.subr.mxu0 0.0
        %672 = vmatpush1.msra.mxu0 0.0
        %673 = vmatprep.subr.mxu0 0.0
        %674 = vmatpush1.msra.mxu0 %v639
        %675 = vmatprep.subr.mxu0 0.0
        %676 = vmatpush1.msra.mxu0 %v637
        %677 = vmatprep.subr.mxu0 0.0
        %678 = vmatpush2.msra.mxu0 0.0
        %679 = vmatprep.subr.mxu0 0.0
        %680 = vmatpush2.msra.mxu0 0.0
        %681 = vmatprep.subr.mxu0 0.0
        %682 = vmatpush2.msra.mxu0 0.0
        %683 = vmatprep.subr.mxu0 0.0
        %684 = vmatpush2.msra.mxu0 0.0
        %685 = vmatprep.subr.mxu0 0.0
        %686 = vmatpush2.msra.mxu0 0.0
        %687 = vmatprep.subr.mxu0 0.0
        %688 = vmatpush2.msra.mxu0 0.0
        %689 = vmatprep.subr.mxu0 0.0
        %690 = vmatpush2.msra.mxu0 0.0
        %691 = vmatprep.subr.mxu0 0.0
        %692 = vmatpush2.msra.mxu0 0.0
        %693 = vmatprep.subr.mxu0 0.0
        %694 = vmatpush2.msra.mxu0 0.0
        %695 = vmatprep.subr.mxu0 0.0
        %696 = vmatpush2.msra.mxu0 0.0
        %697 = vmatprep.subr.mxu0 0.0
        %698 = vmatpush2.msra.mxu0 0.0
        %699 = vmatprep.subr.mxu0 0.0
        %700 = vmatpush2.msra.mxu0 0.0
        %701 = vmatprep.subr.mxu0 0.0
        %702 = vmatpush2.msra.mxu0 0.0
        %703 = vmatprep.subr.mxu0 0.0
        %704 = vmatpush2.msra.mxu0 0.0
        %705 = vmatprep.subr.mxu0 0.0
        %706 = vmatpush2.msra.mxu0 0.0
        %707 = vmatprep.subr.mxu0 0.0
        %708 = vmatpush2.msra.mxu0 0.0
        %709 = vmatprep.mubr.f32.mxu0 0.0
        %710 = vmatmul.mubr.f32.gmra.mxu0 %v643
        %v711 = vpop.f32.mrf.mxu0
        %v712 = vadd.f32 0.0, %v711
        %v713 = vpop.f32.mrf.mxu0
        %714 = vdwg.mxu0
        %v715 = vadd.f32 %v633, %v712
        %716 = vst.msk [vmem:[%s626] sm:$0xff] %vm328, %v715
        %717 = vrot.lane.b32.xlu0 %v323, 112
        %v718 = vpop.permute.xlu0 %717
        %719 = vrot.lane.b32.xlu0 %v324, 112
        %v720 = vpop.permute.xlu0 %719
        %721 = vrot.lane.b32.xlu0 %v325, 112
        %v722 = vpop.permute.xlu0 %721
        %v723 = vsel %vm328, %v718, 0
        %v725 = vsel %vm328, %v720, 0
        %v727 = vsel %vm328, %v722, 0
        %729 = vmatprep.subr.mxu0 0.0
        %730 = vmatpush1.xpose.msra.mxu0 0.0
        %731 = vmatprep.subr.mxu0 0.0
        %732 = vmatpush1.xpose.msra.mxu0 0.0
        %733 = vmatprep.subr.mxu0 0.0
        %734 = vmatpush1.xpose.msra.mxu0 0.0
        %735 = vmatprep.subr.mxu0 0.0
        %736 = vmatpush1.xpose.msra.mxu0 0.0
        %737 = vmatprep.subr.mxu0 0.0
        %738 = vmatpush1.xpose.msra.mxu0 0.0
        %739 = vmatprep.subr.mxu0 0.0
        %740 = vmatpush1.xpose.msra.mxu0 0.0
        %741 = vmatprep.subr.mxu0 0.0
        %742 = vmatpush1.xpose.msra.mxu0 0.0
        %743 = vmatprep.subr.mxu0 0.0
        %744 = vmatpush1.xpose.msra.mxu0 0.0
        %745 = vmatprep.subr.mxu0 0.0
        %746 = vmatpush1.xpose.msra.mxu0 0.0
        %747 = vmatprep.subr.mxu0 0.0
        %748 = vmatpush1.xpose.msra.mxu0 0.0
        %749 = vmatprep.subr.mxu0 0.0
        %750 = vmatpush1.xpose.msra.mxu0 0.0
        %751 = vmatprep.subr.mxu0 0.0
        %752 = vmatpush1.xpose.msra.mxu0 0.0
        %753 = vmatprep.subr.mxu0 0.0
        %754 = vmatpush1.xpose.msra.mxu0 0.0
        %755 = vmatprep.subr.mxu0 0.0
        %756 = vmatpush1.xpose.msra.mxu0 0.0
        %757 = vmatprep.subr.mxu0 0.0
        %758 = vmatpush1.xpose.msra.mxu0 %v727
        %759 = vmatprep.subr.mxu0 0.0
        %760 = vmatpush1.xpose.msra.mxu0 %v725
        %761 = vmatprep.subr.mxu0 0.0
        %762 = vmatpush2.xpose.msra.mxu0 0.0
        %763 = vmatprep.subr.mxu0 0.0
        %764 = vmatpush2.xpose.msra.mxu0 0.0
        %765 = vmatprep.subr.mxu0 0.0
        %766 = vmatpush2.xpose.msra.mxu0 0.0
        %767 = vmatprep.subr.mxu0 0.0
        %768 = vmatpush2.xpose.msra.mxu0 0.0
        %769 = vmatprep.subr.mxu0 0.0
        %770 = vmatpush2.xpose.msra.mxu0 0.0
        %771 = vmatprep.subr.mxu0 0.0
        %772 = vmatpush2.xpose.msra.mxu0 0.0
        %773 = vmatprep.subr.mxu0 0.0
        %774 = vmatpush2.xpose.msra.mxu0 0.0
        %775 = vmatprep.subr.mxu0 0.0
        %776 = vmatpush2.xpose.msra.mxu0 0.0
        %777 = vmatprep.subr.mxu0 0.0
        %778 = vmatpush2.xpose.msra.mxu0 0.0
        %779 = vmatprep.subr.mxu0 0.0
        %780 = vmatpush2.xpose.msra.mxu0 0.0
        %781 = vmatprep.subr.mxu0 0.0
        %782 = vmatpush2.xpose.msra.mxu0 0.0
        %783 = vmatprep.subr.mxu0 0.0
        %784 = vmatpush2.xpose.msra.mxu0 0.0
        %785 = vmatprep.subr.mxu0 0.0
        %786 = vmatpush2.xpose.msra.mxu0 0.0
        %787 = vmatprep.subr.mxu0 0.0
        %788 = vmatpush2.xpose.msra.mxu0 0.0
        %789 = vmatprep.subr.mxu0 0.0
        %790 = vmatpush2.xpose.msra.mxu0 0.0
        %791 = vmatprep.subr.mxu0 0.0
        %792 = vmatpush2.xpose.msra.mxu0 0.0
        %793 = vmatprep.mubr.f32.mxu0 0.0
        %794 = vmatmul.mubr.f32.gmra.mxu0 %v723
        %v795 = vpop.f32.mrf.mxu0
        %v796 = vadd.f32 0.0, %v795
        %v797 = vpop.f32.mrf.mxu0
        %798 = vdwg.mxu0
        %v799 = vmul.f32 %v796, 0.35355338
        %s800 = scalar_lea.vmem [#allocation2], 16
        %v801 = vld [vmem:[%s800] sm:$0xff]
        %v802 = vsel %vm410, %v799, -inf
        %803 = vmax.xlane.f32.xlu0 %v802
        %v804 = vpop.xlane.xlu0 %803
        %v805 = vmax.f32 %v801, %v804
        %v806 = vsub.f32 %v801, %v805
        %v807 = vmul.f32 %v806, 1.442695
        %v808 = vpow.pop %v807
        %810 = vset.pattern.permute.xlu0 0
        %811 = vperm.xlu0 %810, %v805
        %v812 = vpop.permute.xlu0 %811
        %v814 = vsub.f32 %v799, %v812
        %v815 = vmul.f32 %v814, 1.442695
        %v816 = vpow.pop %v815
        %s817 = scalar_lea.vmem [#allocation3], 16
        %v818 = vld [vmem:[%s817] sm:$0xff]
        %v819 = vmul.f32 %v808, %v818
        %v820 = vsel %vm410, %v816, 0.0
        %821 = vadd.xlane.f32.xlu0 %v820
        %v822 = vpop.xlane.xlu0 %821
        %v823 = vadd.f32 %v819, %v822
        %824 = vst.msk [vmem:[%s817] sm:$0xff] %vm432, %v823
        %825 = vst.msk [vmem:[%s800] sm:$0xff] %vm432, %v805
        %s826 = scalar_lea.vmem [#allocation4], 16
        %v827 = vld [vmem:[%s826] sm:$0xff]
        %829 = vset.pattern.permute.xlu0 0
        %830 = vperm.xlu0 %829, %v808
        %v831 = vpop.permute.xlu0 %830
        %v833 = vmul.f32 %v831, %v827
        %834 = vrot.lane.b32.xlu0 %v326, 112
        %v835 = vpop.permute.xlu0 %834
        %836 = vrot.lane.b32.xlu0 %v327, 112
        %v837 = vpop.permute.xlu0 %836
        %v841 = vsel %vm410, %v816, 0
        %843 = vmatprep.subr.mxu0 0.0
        %844 = vmatpush1.msra.mxu0 0.0
        %845 = vmatprep.subr.mxu0 0.0
        %846 = vmatpush1.msra.mxu0 0.0
        %847 = vmatprep.subr.mxu0 0.0
        %848 = vmatpush1.msra.mxu0 0.0
        %849 = vmatprep.subr.mxu0 0.0
        %850 = vmatpush1.msra.mxu0 0.0
        %851 = vmatprep.subr.mxu0 0.0
        %852 = vmatpush1.msra.mxu0 0.0
        %853 = vmatprep.subr.mxu0 0.0
        %854 = vmatpush1.msra.mxu0 0.0
        %855 = vmatprep.subr.mxu0 0.0
        %856 = vmatpush1.msra.mxu0 0.0
        %857 = vmatprep.subr.mxu0 0.0
        %858 = vmatpush1.msra.mxu0 0.0
        %859 = vmatprep.subr.mxu0 0.0
        %860 = vmatpush1.msra.mxu0 0.0
        %861 = vmatprep.subr.mxu0 0.0
        %862 = vmatpush1.msra.mxu0 0.0
        %863 = vmatprep.subr.mxu0 0.0
        %864 = vmatpush1.msra.mxu0 0.0
        %865 = vmatprep.subr.mxu0 0.0
        %866 = vmatpush1.msra.mxu0 0.0
        %867 = vmatprep.subr.mxu0 0.0
        %868 = vmatpush1.msra.mxu0 0.0
        %869 = vmatprep.subr.mxu0 0.0
        %870 = vmatpush1.msra.mxu0 0.0
        %871 = vmatprep.subr.mxu0 0.0
        %872 = vmatpush1.msra.mxu0 %v837
        %873 = vmatprep.subr.mxu0 0.0
        %874 = vmatpush1.msra.mxu0 %v835
        %875 = vmatprep.subr.mxu0 0.0
        %876 = vmatpush2.msra.mxu0 0.0
        %877 = vmatprep.subr.mxu0 0.0
        %878 = vmatpush2.msra.mxu0 0.0
        %879 = vmatprep.subr.mxu0 0.0
        %880 = vmatpush2.msra.mxu0 0.0
        %881 = vmatprep.subr.mxu0 0.0
        %882 = vmatpush2.msra.mxu0 0.0
        %883 = vmatprep.subr.mxu0 0.0
        %884 = vmatpush2.msra.mxu0 0.0
        %885 = vmatprep.subr.mxu0 0.0
        %886 = vmatpush2.msra.mxu0 0.0
        %887 = vmatprep.subr.mxu0 0.0
        %888 = vmatpush2.msra.mxu0 0.0
        %889 = vmatprep.subr.mxu0 0.0
        %890 = vmatpush2.msra.mxu0 0.0
        %891 = vmatprep.subr.mxu0 0.0
        %892 = vmatpush2.msra.mxu0 0.0
        %893 = vmatprep.subr.mxu0 0.0
        %894 = vmatpush2.msra.mxu0 0.0
        %895 = vmatprep.subr.mxu0 0.0
        %896 = vmatpush2.msra.mxu0 0.0
        %897 = vmatprep.subr.mxu0 0.0
        %898 = vmatpush2.msra.mxu0 0.0
        %899 = vmatprep.subr.mxu0 0.0
        %900 = vmatpush2.msra.mxu0 0.0
        %901 = vmatprep.subr.mxu0 0.0
        %902 = vmatpush2.msra.mxu0 0.0
        %903 = vmatprep.subr.mxu0 0.0
        %904 = vmatpush2.msra.mxu0 0.0
        %905 = vmatprep.subr.mxu0 0.0
        %906 = vmatpush2.msra.mxu0 0.0
        %907 = vmatprep.mubr.f32.mxu0 0.0
        %908 = vmatmul.mubr.f32.gmra.mxu0 %v841
        %v909 = vpop.f32.mrf.mxu0
        %v910 = vadd.f32 0.0, %v909
        %v911 = vpop.f32.mrf.mxu0
        %912 = vdwg.mxu0
        %v913 = vadd.f32 %v833, %v910
        %914 = vst.msk [vmem:[%s826] sm:$0xff] %vm328, %v913
        %915 = vrot.lane.b32.xlu0 %v323, 104
        %v916 = vpop.permute.xlu0 %915
        %917 = vrot.lane.b32.xlu0 %v324, 104
        %v918 = vpop.permute.xlu0 %917
        %919 = vrot.lane.b32.xlu0 %v325, 104
        %v920 = vpop.permute.xlu0 %919
        %v921 = vsel %vm328, %v916, 0
        %v923 = vsel %vm328, %v918, 0
        %v925 = vsel %vm328, %v920, 0
        %927 = vmatprep.subr.mxu0 0.0
        %928 = vmatpush1.xpose.msra.mxu0 0.0
        %929 = vmatprep.subr.mxu0 0.0
        %930 = vmatpush1.xpose.msra.mxu0 0.0
        %931 = vmatprep.subr.mxu0 0.0
        %932 = vmatpush1.xpose.msra.mxu0 0.0
        %933 = vmatprep.subr.mxu0 0.0
        %934 = vmatpush1.xpose.msra.mxu0 0.0
        %935 = vmatprep.subr.mxu0 0.0
        %936 = vmatpush1.xpose.msra.mxu0 0.0
        %937 = vmatprep.subr.mxu0 0.0
        %938 = vmatpush1.xpose.msra.mxu0 0.0
        %939 = vmatprep.subr.mxu0 0.0
        %940 = vmatpush1.xpose.msra.mxu0 0.0
        %941 = vmatprep.subr.mxu0 0.0
        %942 = vmatpush1.xpose.msra.mxu0 0.0
        %943 = vmatprep.subr.mxu0 0.0
        %944 = vmatpush1.xpose.msra.mxu0 0.0
        %945 = vmatprep.subr.mxu0 0.0
        %946 = vmatpush1.xpose.msra.mxu0 0.0
        %947 = vmatprep.subr.mxu0 0.0
        %948 = vmatpush1.xpose.msra.mxu0 0.0
        %949 = vmatprep.subr.mxu0 0.0
        %950 = vmatpush1.xpose.msra.mxu0 0.0
        %951 = vmatprep.subr.mxu0 0.0
        %952 = vmatpush1.xpose.msra.mxu0 0.0
        %953 = vmatprep.subr.mxu0 0.0
        %954 = vmatpush1.xpose.msra.mxu0 0.0
        %955 = vmatprep.subr.mxu0 0.0
        %956 = vmatpush1.xpose.msra.mxu0 %v925
        %957 = vmatprep.subr.mxu0 0.0
        %958 = vmatpush1.xpose.msra.mxu0 %v923
        %959 = vmatprep.subr.mxu0 0.0
        %960 = vmatpush2.xpose.msra.mxu0 0.0
        %961 = vmatprep.subr.mxu0 0.0
        %962 = vmatpush2.xpose.msra.mxu0 0.0
        %963 = vmatprep.subr.mxu0 0.0
        %964 = vmatpush2.xpose.msra.mxu0 0.0
        %965 = vmatprep.subr.mxu0 0.0
        %966 = vmatpush2.xpose.msra.mxu0 0.0
        %967 = vmatprep.subr.mxu0 0.0
        %968 = vmatpush2.xpose.msra.mxu0 0.0
        %969 = vmatprep.subr.mxu0 0.0
        %970 = vmatpush2.xpose.msra.mxu0 0.0
        %971 = vmatprep.subr.mxu0 0.0
        %972 = vmatpush2.xpose.msra.mxu0 0.0
        %973 = vmatprep.subr.mxu0 0.0
        %974 = vmatpush2.xpose.msra.mxu0 0.0
        %975 = vmatprep.subr.mxu0 0.0
        %976 = vmatpush2.xpose.msra.mxu0 0.0
        %977 = vmatprep.subr.mxu0 0.0
        %978 = vmatpush2.xpose.msra.mxu0 0.0
        %979 = vmatprep.subr.mxu0 0.0
        %980 = vmatpush2.xpose.msra.mxu0 0.0
        %981 = vmatprep.subr.mxu0 0.0
        %982 = vmatpush2.xpose.msra.mxu0 0.0
        %983 = vmatprep.subr.mxu0 0.0
        %984 = vmatpush2.xpose.msra.mxu0 0.0
        %985 = vmatprep.subr.mxu0 0.0
        %986 = vmatpush2.xpose.msra.mxu0 0.0
        %987 = vmatprep.subr.mxu0 0.0
        %988 = vmatpush2.xpose.msra.mxu0 0.0
        %989 = vmatprep.subr.mxu0 0.0
        %990 = vmatpush2.xpose.msra.mxu0 0.0
        %991 = vmatprep.mubr.f32.mxu0 0.0
        %992 = vmatmul.mubr.f32.gmra.mxu0 %v921
        %v993 = vpop.f32.mrf.mxu0
        %v994 = vadd.f32 0.0, %v993
        %v995 = vpop.f32.mrf.mxu0
        %996 = vdwg.mxu0
        %v997 = vmul.f32 %v994, 0.35355338
        %s998 = scalar_lea.vmem [#allocation2], 24
        %v999 = vld [vmem:[%s998] sm:$0xff]
        %v1000 = vsel %vm410, %v997, -inf
        %1001 = vmax.xlane.f32.xlu0 %v1000
        %v1002 = vpop.xlane.xlu0 %1001
        %v1003 = vmax.f32 %v999, %v1002
        %v1004 = vsub.f32 %v999, %v1003
        %v1005 = vmul.f32 %v1004, 1.442695
        %v1006 = vpow.pop %v1005
        %1008 = vset.pattern.permute.xlu0 0
        %1009 = vperm.xlu0 %1008, %v1003
        %v1010 = vpop.permute.xlu0 %1009
        %v1012 = vsub.f32 %v997, %v1010
        %v1013 = vmul.f32 %v1012, 1.442695
        %v1014 = vpow.pop %v1013
        %s1015 = scalar_lea.vmem [#allocation3], 24
        %v1016 = vld [vmem:[%s1015] sm:$0xff]
        %v1017 = vmul.f32 %v1006, %v1016
        %v1018 = vsel %vm410, %v1014, 0.0
        %1019 = vadd.xlane.f32.xlu0 %v1018
        %v1020 = vpop.xlane.xlu0 %1019
        %v1021 = vadd.f32 %v1017, %v1020
        %1022 = vst.msk [vmem:[%s1015] sm:$0xff] %vm432, %v1021
        %1023 = vst.msk [vmem:[%s998] sm:$0xff] %vm432, %v1003
        %s1024 = scalar_lea.vmem [#allocation4], 24
        %v1025 = vld [vmem:[%s1024] sm:$0xff]
        %1027 = vset.pattern.permute.xlu0 0
        %1028 = vperm.xlu0 %1027, %v1006
        %v1029 = vpop.permute.xlu0 %1028
        %v1031 = vmul.f32 %v1029, %v1025
        %1032 = vrot.lane.b32.xlu0 %v326, 104
        %v1033 = vpop.permute.xlu0 %1032
        %1034 = vrot.lane.b32.xlu0 %v327, 104
        %v1035 = vpop.permute.xlu0 %1034
        %v1039 = vsel %vm410, %v1014, 0
        %1041 = vmatprep.subr.mxu0 0.0
        %1042 = vmatpush1.msra.mxu0 0.0
        %1043 = vmatprep.subr.mxu0 0.0
        %1044 = vmatpush1.msra.mxu0 0.0
        %1045 = vmatprep.subr.mxu0 0.0
        %1046 = vmatpush1.msra.mxu0 0.0
        %1047 = vmatprep.subr.mxu0 0.0
        %1048 = vmatpush1.msra.mxu0 0.0
        %1049 = vmatprep.subr.mxu0 0.0
        %1050 = vmatpush1.msra.mxu0 0.0
        %1051 = vmatprep.subr.mxu0 0.0
        %1052 = vmatpush1.msra.mxu0 0.0
        %1053 = vmatprep.subr.mxu0 0.0
        %1054 = vmatpush1.msra.mxu0 0.0
        %1055 = vmatprep.subr.mxu0 0.0
        %1056 = vmatpush1.msra.mxu0 0.0
        %1057 = vmatprep.subr.mxu0 0.0
        %1058 = vmatpush1.msra.mxu0 0.0
        %1059 = vmatprep.subr.mxu0 0.0
        %1060 = vmatpush1.msra.mxu0 0.0
        %1061 = vmatprep.subr.mxu0 0.0
        %1062 = vmatpush1.msra.mxu0 0.0
        %1063 = vmatprep.subr.mxu0 0.0
        %1064 = vmatpush1.msra.mxu0 0.0
        %1065 = vmatprep.subr.mxu0 0.0
        %1066 = vmatpush1.msra.mxu0 0.0
        %1067 = vmatprep.subr.mxu0 0.0
        %1068 = vmatpush1.msra.mxu0 0.0
        %1069 = vmatprep.subr.mxu0 0.0
        %1070 = vmatpush1.msra.mxu0 %v1035
        %1071 = vmatprep.subr.mxu0 0.0
        %1072 = vmatpush1.msra.mxu0 %v1033
        %1073 = vmatprep.subr.mxu0 0.0
        %1074 = vmatpush2.msra.mxu0 0.0
        %1075 = vmatprep.subr.mxu0 0.0
        %1076 = vmatpush2.msra.mxu0 0.0
        %1077 = vmatprep.subr.mxu0 0.0
        %1078 = vmatpush2.msra.mxu0 0.0
        %1079 = vmatprep.subr.mxu0 0.0
        %1080 = vmatpush2.msra.mxu0 0.0
        %1081 = vmatprep.subr.mxu0 0.0
        %1082 = vmatpush2.msra.mxu0 0.0
        %1083 = vmatprep.subr.mxu0 0.0
        %1084 = vmatpush2.msra.mxu0 0.0
        %1085 = vmatprep.subr.mxu0 0.0
        %1086 = vmatpush2.msra.mxu0 0.0
        %1087 = vmatprep.subr.mxu0 0.0
        %1088 = vmatpush2.msra.mxu0 0.0
        %1089 = vmatprep.subr.mxu0 0.0
        %1090 = vmatpush2.msra.mxu0 0.0
        %1091 = vmatprep.subr.mxu0 0.0
        %1092 = vmatpush2.msra.mxu0 0.0
        %1093 = vmatprep.subr.mxu0 0.0
        %1094 = vmatpush2.msra.mxu0 0.0
        %1095 = vmatprep.subr.mxu0 0.0
        %1096 = vmatpush2.msra.mxu0 0.0
        %1097 = vmatprep.subr.mxu0 0.0
        %1098 = vmatpush2.msra.mxu0 0.0
        %1099 = vmatprep.subr.mxu0 0.0
        %1100 = vmatpush2.msra.mxu0 0.0
        %1101 = vmatprep.subr.mxu0 0.0
        %1102 = vmatpush2.msra.mxu0 0.0
        %1103 = vmatprep.subr.mxu0 0.0
        %1104 = vmatpush2.msra.mxu0 0.0
        %1105 = vmatprep.mubr.f32.mxu0 0.0
        %1106 = vmatmul.mubr.f32.gmra.mxu0 %v1039
        %v1107 = vpop.f32.mrf.mxu0
        %v1108 = vadd.f32 0.0, %v1107
        %v1109 = vpop.f32.mrf.mxu0
        %1110 = vdwg.mxu0
        %v1111 = vadd.f32 %v1031, %v1108
        %1112 = vst.msk [vmem:[%s1024] sm:$0xff] %vm328, %v1111
        // Predicated region
        $region49: #{_lambda_.1} parent=31 // pred_check
          %p1113 = pneg %p305
        $region50: #{_lambda_.1} parent=31 // pred_check_branch
          %1115 = sbr.rel (%p1113) target = $region52
        $region51: #{_lambda_.1} parent=31 // pred_region
          %v1116 = vld [vmem:[#allocation3] sm:$0xff]
          %v1117 = vrcp.pop %v1116
          %v1118 = vld [vmem:[#allocation4] sm:$0xff]
          %1120 = vset.pattern.permute.xlu0 0
          %1121 = vperm.xlu0 %1120, %v1117
          %v1122 = vpop.permute.xlu0 %1121
          %v1124 = vmul.f32 %v1118, %v1122
          %1125 = vst.msk [vmem:[%s304] sm:$0xff] %vm328, %v1124
          %v1126 = vld [vmem:[%s617] sm:$0xff]
          %v1127 = vrcp.pop %v1126
          %v1128 = vld [vmem:[%s626] sm:$0xff]
          %1130 = vset.pattern.permute.xlu0 0
          %1131 = vperm.xlu0 %1130, %v1127
          %v1132 = vpop.permute.xlu0 %1131
          %v1134 = vmul.f32 %v1128, %v1132
          %s1135 = scalar_lea.vmem %s304, 8
          %1136 = vst.msk [vmem:[%s1135] sm:$0xff] %vm328, %v1134
          %v1137 = vld [vmem:[%s817] sm:$0xff]
          %v1138 = vrcp.pop %v1137
          %v1139 = vld [vmem:[%s826] sm:$0xff]
          %1141 = vset.pattern.permute.xlu0 0
          %1142 = vperm.xlu0 %1141, %v1138
          %v1143 = vpop.permute.xlu0 %1142
          %v1145 = vmul.f32 %v1139, %v1143
          %s1146 = scalar_lea.vmem %s304, 16
          %1147 = vst.msk [vmem:[%s1146] sm:$0xff] %vm328, %v1145
          %v1148 = vld [vmem:[%s1015] sm:$0xff]
          %v1149 = vrcp.pop %v1148
          %v1150 = vld [vmem:[%s1024] sm:$0xff]
          %1152 = vset.pattern.permute.xlu0 0
          %1153 = vperm.xlu0 %1152, %v1149
          %v1154 = vpop.permute.xlu0 %1153
          %v1156 = vmul.f32 %v1150, %v1154
          %s1157 = scalar_lea.vmem %s304, 24
          %1158 = vst.msk [vmem:[%s1157] sm:$0xff] %vm328, %v1156
        $region52: #{_lambda_.1} parent=31 // pred_fallthru
          _
        %p1159 = scmp.lt.s32.totalorder %s25, 1
        %s1160 = scalar_select %p1159, %s25, 1
        %p1161 = scmp.lt.s32.totalorder %s26, 0
        %s1162 = scalar_select %p1161, %s26, 0
        %s1163 = smul.addr %s1160, 4
        %s1164 = sadd.s32 %s1162, %s1163
        %s1165 = smul.addr %s1164, 8
        %s1166 = scalar_lea.vmem %s3, %s1165
        // Predicated region
        $region53: #{_lambda_.1} parent=31 // pred_check
          %p1167 = pneg %p143
        $region54: #{_lambda_.1} parent=31 // pred_check_branch
          %1169 = sbr.rel (%p1167) target = $region56
        $region55: #{_lambda_.1} parent=31 // pred_region
          _
        $region56: #{_lambda_.1} parent=31 // pred_fallthru
          _
      $region32: #{_lambda_.1} parent=5 // pred_fallthru
        _
      %p1170 = scmp.le.s32.totalorder 2, %s15
      // Predicated region
      $region57: #{_lambda_.1} parent=5 // pred_check
        %p1171 = pneg %p1170
      $region58: #{_lambda_.1} parent=5 // pred_check_branch
        %1173 = sbr.rel (%p1171) target = $region60
      $region59: #{_lambda_.1} parent=5 // pred_region
        %s1174 = ssub.s32 %s15, 2
        // Predicated region
        $region61: #{_lambda_.1} parent=59 // pred_check
          %p1175 = pneg %p149
        $region62: #{_lambda_.1} parent=59 // pred_check_branch
          %1177 = sbr.rel (%p1175) target = $region64
        $region63: #{_lambda_.1} parent=59 // pred_region
          %p1178 = scmp.lt.s32.totalorder %s28, 1
          %s1179 = scalar_select %p1178, %s28, 1
          %p1180 = scmp.lt.s32.totalorder %s29, 0
          %s1181 = scalar_select %p1180, %s29, 0
          %s1182 = smul.addr %s1179, 4
          %s1183 = sadd.s32 %s1181, %s1182
          %s1184 = smul.addr %s1183, 8
          %s1185 = scalar_lea.vmem %s3, %s1184
        $region64: #{_lambda_.1} parent=59 // pred_fallthru
          _
      $region60: #{_lambda_.1} parent=5 // pred_fallthru
        _
    $region6: #{_lambda_.1} parent=1 // loop_footer
      %s19 = sadd.s32 1, %s15
    $region7: #{_lambda_.1} parent=1 // loop_footer_branch
      %14 = sbr.rel target = $region3
    $region8: #{_lambda_.1} parent=1 // loop_exit
      _
    %1186 = vsyncpa [#allocation6], 1
    %s1187 = scalar_lea.sflag [#allocation6], 1
    %1188 = vsyncpa %s1187, 1
    %1189 = vsyncpa [#allocation8], 1
    %s1190 = scalar_lea.sflag [#allocation8], 1
    %1191 = vsyncpa %s1190, 1

</llo_original>
